<compile_context>
chip_gen: v7x
topology: tpu7x:2x2x1
jax: 0.10.0
libtpu: 0.0.40
codegen_flags: <defaults>
</compile_context>

<pallas_src>
import functools

import jax
import jax.numpy as jnp
from jax.experimental import pallas as pl
from jax.experimental.pallas import tpu as pltpu

# ---------------------------------------------------------------------------
# Fixed (small) architecture, mirroring NP.__init__ with
#   encoder_specs = [(HID, ReLU), (HID, ReLU), (R_DIM, None)]
#   decoder_specs = [(HID, ReLU), (HID, ReLU), (Y_DIM, None)]
# ---------------------------------------------------------------------------
X_DIM = 3
Y_DIM = 2
R_DIM = 8
Z_DIM = 4
HID = 32
N_CONTEXT = 8
N_TARGET = 8

_N_W = 9        # packed weight slabs (enc: x,y,l1,l2,heads ; dec: x,z,l1,l2)
_N_B = 7        # packed bias rows

_VMEM = pl.BlockSpec(memory_space=pltpu.MemorySpace.VMEM)


# ---------------------------------------------------------------------------
# Fused Pallas kernel: encoder(ctx) + encoder(tgt) + z-heads + sample + decoder
# ---------------------------------------------------------------------------
def _np_fused_kernel(xc_ref, yc_ref, xt_ref, yt_ref, eps_ref,
                     w_ref, b_ref, y_ref, z_ref, *, training):
    f32 = jnp.float32

    # --- unpack weights (static slices of the packed (9, HID, HID) buffer) ---
    w0x = w_ref[0, :X_DIM, :]        # encoder layer0, x columns   (X_DIM, HID)
    w0y = w_ref[1, :Y_DIM, :]        # encoder layer0, y columns   (Y_DIM, HID)
    w1 = w_ref[2]                    # encoder layer1              (HID, HID)
    w2 = w_ref[3]                    # encoder layer2 (cols>=R_DIM are 0)
    wh = w_ref[4]                    # fused [r_to_z_mean | r_to_z_logvar]
    wd0x = w_ref[5, :X_DIM, :]       # decoder layer0, x columns   (X_DIM, HID)
    wd0z = w_ref[6, :Z_DIM, :]       # decoder layer0, z columns   (Z_DIM, HID)
    wd1 = w_ref[7]                   # decoder layer1              (HID, HID)
    wd2 = w_ref[8]                   # decoder layer2 (cols>=Y_DIM are 0)

    b0, b1, b2, bh = b_ref[0], b_ref[1], b_ref[2], b_ref[3]       # each (1, HID)
    bd0, bd1, bd2 = b_ref[4], b_ref[5], b_ref[6]

    # TODO(synk): pass precision=HIGHEST on the dots if bit-level parity with
    # float32 torch.nn.Linear is ever required (preferred_element_type only
    # fixes the accumulator).
    def encode(x, y):
        # split-weight matmul == Linear(concat([x, y]) @ W0) without any concat
        h = (jnp.dot(x, w0x, preferred_element_type=f32)
             + jnp.dot(y, w0y, preferred_element_type=f32) + b0)
        h = jnp.maximum(h, 0.0)                                   # ReLU
        h = jnp.maximum(jnp.dot(h, w1, preferred_element_type=f32) + b1, 0.0)
        r = jnp.dot(h, w2, preferred_element_type=f32) + b2       # cols>=R_DIM == 0
        r_agg = jnp.mean(r, axis=0, keepdims=True)                # set aggregate (1, HID)
        # fused z heads: cols [:Z_DIM] = mean, [Z_DIM:2*Z_DIM] = logvar
        return jnp.dot(r_agg, wh, preferred_element_type=f32) + bh

    stats_c = encode(xc_ref[...], yc_ref[...])
    if training:                                                  # static python bool
        stats_t = encode(xt_ref[...], yt_ref[...])
    else:
        stats_t = stats_c

    z_ref[0] = stats_c[:, :2 * Z_DIM]                             # context (mean|logvar)
    z_ref[1] = stats_t[:, :2 * Z_DIM]                             # target  (mean|logvar)

    # --- reparameterized sample from z_target (how_many = 1) ---
    mean_t = stats_t[:, :Z_DIM]
    logvar_t = stats_t[:, Z_DIM:2 * Z_DIM]
    z_samp = mean_t + jnp.exp(0.5 * logvar_t) * eps_ref[...]      # (1, Z_DIM)

    # --- decoder g([x, z]) with split first-layer weights (no concat/broadcast) ---
    g = (jnp.dot(xt_ref[...], wd0x, preferred_element_type=f32)
         + jnp.dot(z_samp, wd0z, preferred_element_type=f32)      # (1,HID) broadcasts
         + bd0)
    g = jnp.maximum(g, 0.0)
    g = jnp.maximum(jnp.dot(g, wd1, preferred_element_type=f32) + bd1, 0.0)
    yhat = jnp.dot(g, wd2, preferred_element_type=f32) + bd2      # cols>=Y_DIM == 0
    y_ref[0] = yhat[:, :Y_DIM]


# ---------------------------------------------------------------------------
# Forward wrapper (jitted; one pallas_call + trivial output reshaping)
# ---------------------------------------------------------------------------
@functools.partial(jax.jit, static_argnames=("training",))
def np_forward(x_context, y_context, x_target, y_target, packed_params, eps_key,
               *, training=True):
    """Equivalent of NP.forward. Returns (y_hat, z_target, z_context)."""
    w_all, b_all = packed_params
    eps = jax.random.normal(eps_key, (1, Z_DIM), jnp.float32)
    n_t = x_target.shape[0]

    kernel = functools.partial(_np_fused_kernel, training=training)
    y_hat, z_stats = pl.pallas_call(
        kernel,
        out_shape=(jax.ShapeDtypeStruct((1, n_t, Y_DIM), jnp.float32),
                   jax.ShapeDtypeStruct((2, 1, 2 * Z_DIM), jnp.float32)),
        in_specs=[_VMEM] * 7,
        out_specs=(_VMEM, _VMEM),
    )(x_context.astype(jnp.float32), y_context.astype(jnp.float32),
      x_target.astype(jnp.float32), y_target.astype(jnp.float32),
      eps, w_all, b_all)

    zs = z_stats.reshape(2, 2, Z_DIM)                    # (set, mean/logvar, z)
    z_context = (zs[0, 0][:, None], zs[0, 1][:, None])   # each (Z_DIM, 1)
    if training:
        z_target = (zs[1, 0][:, None], zs[1, 1][:, None])
    else:
        z_target = z_context
    return y_hat, z_target, z_context


# ---------------------------------------------------------------------------
# Parameter init (weights stored as (in, out) = torch W.T) and packing
# ---------------------------------------------------------------------------
def _init_linear(key, d_in, d_out):
    kw, kb = jax.random.split(key)
    scale = 1.0 / jnp.sqrt(jnp.float32(d_in))
    w = jax.random.uniform(kw, (d_in, d_out), jnp.float32, -scale, scale)
    b = jax.random.uniform(kb, (1, d_out), jnp.float32, -scale, scale)
    return w, b


def init_params(key):
    keys = jax.random.split(key, 8)
    return {
        "enc": [
            _init_linear(keys[0], X_DIM + Y_DIM, HID),
            _init_linear(keys[1], HID, HID),
            _init_linear(keys[2], HID, R_DIM),
        ],
        "r_to_z_mean": _init_linear(keys[3], R_DIM, Z_DIM),
        "r_to_z_logvar": _init_linear(keys[4], R_DIM, Z_DIM),
        "dec": [
            _init_linear(keys[5], X_DIM + Z_DIM, HID),
            _init_linear(keys[6], HID, HID),
            _init_linear(keys[7], HID, Y_DIM),
        ],
    }


def pack_params(params):
    """Zero-pad and stack all weights/biases into two VMEM-friendly buffers."""
    (w0, b0), (w1, b1), (w2, b2) = params["enc"]
    wm, bm = params["r_to_z_mean"]
    wv, bv = params["r_to_z_logvar"]
    (wd0, bd0), (wd1, bd1), (wd2, bd2) = params["dec"]

    w_all = jnp.zeros((_N_W, HID, HID), jnp.float32)
    b_all = jnp.zeros((_N_B, 1, HID), jnp.float32)

    w_all = w_all.at[0, :X_DIM, :].set(w0[:X_DIM, :])             # enc W0 (x part)
    w_all = w_all.at[1, :Y_DIM, :].set(w0[X_DIM:, :])             # enc W0 (y part)
    w_all = w_all.at[2].set(w1)                                   # enc W1
    w_all = w_all.at[3, :, :R_DIM].set(w2)                        # enc W2 (pad cols)
    w_all = w_all.at[4, :R_DIM, :Z_DIM].set(wm)                   # fused z heads
    w_all = w_all.at[4, :R_DIM, Z_DIM:2 * Z_DIM].set(wv)
    w_all = w_all.at[5, :X_DIM, :].set(wd0[:X_DIM, :])            # dec W0 (x part)
    w_all = w_all.at[6, :Z_DIM, :].set(wd0[X_DIM:, :])            # dec W0 (z part)
    w_all = w_all.at[7].set(wd1)                                  # dec W1
    w_all = w_all.at[8, :, :Y_DIM].set(wd2)                       # dec W2 (pad cols)

    b_all = b_all.at[0].set(b0)
    b_all = b_all.at[1].set(b1)
    b_all = b_all.at[2, :, :R_DIM].set(b2)
    b_all = b_all.at[3, :, :Z_DIM].set(bm)
    b_all = b_all.at[3, :, Z_DIM:2 * Z_DIM].set(bv)
    b_all = b_all.at[4].set(bd0)
    b_all = b_all.at[5].set(bd1)
    b_all = b_all.at[6, :, :Y_DIM].set(bd2)
    return w_all, b_all


# ---------------------------------------------------------------------------
if __name__ == "__main__":
    root = jax.random.PRNGKey(0)
    k_par, k_xc, k_yc, k_xt, k_yt, k_eps = jax.random.split(root, 6)

    params = init_params(k_par)
    packed = pack_params(params)

    x_context = jax.random.normal(k_xc, (N_CONTEXT, X_DIM), jnp.float32)
    y_context = jax.random.normal(k_yc, (N_CONTEXT, Y_DIM), jnp.float32)
    x_target = jax.random.normal(k_xt, (N_TARGET, X_DIM), jnp.float32)
    y_target = jax.random.normal(k_yt, (N_TARGET, Y_DIM), jnp.float32)

    y_hat, z_target, z_context = np_forward(
        x_context, y_context, x_target, y_target, packed, k_eps, training=True)

    jax.block_until_ready(y_hat)
    jax.block_until_ready(z_target)
    jax.block_until_ready(z_context)

    assert y_hat.shape == (1, N_TARGET, Y_DIM)
    assert z_target[0].shape == (Z_DIM, 1) and z_target[1].shape == (Z_DIM, 1)
    assert z_context[0].shape == (Z_DIM, 1) and z_context[1].shape == (Z_DIM, 1)

    print("KERNEL_OK")
</pallas_src>

<mosaic_0001>
module attributes {stable_mosaic.version = 11 : i64} {
  func.func @_np_fused_kernel(%arg0: memref<8x3xf32, #tpu.memory_space<vmem>>, %arg1: memref<8x2xf32, #tpu.memory_space<vmem>>, %arg2: memref<8x3xf32, #tpu.memory_space<vmem>>, %arg3: memref<8x2xf32, #tpu.memory_space<vmem>>, %arg4: memref<1x4xf32, #tpu.memory_space<vmem>>, %arg5: memref<9x32x32xf32, #tpu.memory_space<vmem>>, %arg6: memref<7x1x32xf32, #tpu.memory_space<vmem>>, %arg7: memref<1x8x2xf32, #tpu.memory_space<vmem>>, %arg8: memref<2x1x8xf32, #tpu.memory_space<vmem>>) attributes {dimension_semantics = [], scalar_prefetch = 0 : i64, scratch_operands = 0 : i64, tpu.core_type = #tpu.core_type<tc>} {
    %c0 = arith.constant 0 : index
    %c0_0 = arith.constant 0 : index
    %c0_1 = arith.constant 0 : index
    %0 = vector.load %arg5[%c0, %c0_0, %c0_1] : memref<9x32x32xf32, #tpu.memory_space<vmem>>, vector<1x3x32xf32>
    %1 = vector.shape_cast %0 : vector<1x3x32xf32> to vector<3x32xf32>
    %c1 = arith.constant 1 : index
    %c0_2 = arith.constant 0 : index
    %c0_3 = arith.constant 0 : index
    %2 = vector.load %arg5[%c1, %c0_2, %c0_3] : memref<9x32x32xf32, #tpu.memory_space<vmem>>, vector<1x2x32xf32>
    %3 = vector.shape_cast %2 : vector<1x2x32xf32> to vector<2x32xf32>
    %c2 = arith.constant 2 : index
    %c0_4 = arith.constant 0 : index
    %c0_5 = arith.constant 0 : index
    %4 = vector.load %arg5[%c2, %c0_4, %c0_5] : memref<9x32x32xf32, #tpu.memory_space<vmem>>, vector<1x32x32xf32>
    %5 = vector.shape_cast %4 : vector<1x32x32xf32> to vector<32x32xf32>
    %c3 = arith.constant 3 : index
    %c0_6 = arith.constant 0 : index
    %c0_7 = arith.constant 0 : index
    %6 = vector.load %arg5[%c3, %c0_6, %c0_7] : memref<9x32x32xf32, #tpu.memory_space<vmem>>, vector<1x32x32xf32>
    %7 = vector.shape_cast %6 : vector<1x32x32xf32> to vector<32x32xf32>
    %c4 = arith.constant 4 : index
    %c0_8 = arith.constant 0 : index
    %c0_9 = arith.constant 0 : index
    %8 = vector.load %arg5[%c4, %c0_8, %c0_9] : memref<9x32x32xf32, #tpu.memory_space<vmem>>, vector<1x32x32xf32>
    %9 = vector.shape_cast %8 : vector<1x32x32xf32> to vector<32x32xf32>
    %c5 = arith.constant 5 : index
    %c0_10 = arith.constant 0 : index
    %c0_11 = arith.constant 0 : index
    %10 = vector.load %arg5[%c5, %c0_10, %c0_11] : memref<9x32x32xf32, #tpu.memory_space<vmem>>, vector<1x3x32xf32>
    %11 = vector.shape_cast %10 : vector<1x3x32xf32> to vector<3x32xf32>
    %c6 = arith.constant 6 : index
    %c0_12 = arith.constant 0 : index
    %c0_13 = arith.constant 0 : index
    %12 = vector.load %arg5[%c6, %c0_12, %c0_13] : memref<9x32x32xf32, #tpu.memory_space<vmem>>, vector<1x4x32xf32>
    %13 = vector.shape_cast %12 : vector<1x4x32xf32> to vector<4x32xf32>
    %c7 = arith.constant 7 : index
    %c0_14 = arith.constant 0 : index
    %c0_15 = arith.constant 0 : index
    %14 = vector.load %arg5[%c7, %c0_14, %c0_15] : memref<9x32x32xf32, #tpu.memory_space<vmem>>, vector<1x32x32xf32>
    %15 = vector.shape_cast %14 : vector<1x32x32xf32> to vector<32x32xf32>
    %c8 = arith.constant 8 : index
    %c0_16 = arith.constant 0 : index
    %c0_17 = arith.constant 0 : index
    %16 = vector.load %arg5[%c8, %c0_16, %c0_17] : memref<9x32x32xf32, #tpu.memory_space<vmem>>, vector<1x32x32xf32>
    %17 = vector.shape_cast %16 : vector<1x32x32xf32> to vector<32x32xf32>
    %c0_18 = arith.constant 0 : index
    %c0_19 = arith.constant 0 : index
    %c0_20 = arith.constant 0 : index
    %18 = vector.load %arg6[%c0_18, %c0_19, %c0_20] : memref<7x1x32xf32, #tpu.memory_space<vmem>>, vector<1x1x32xf32>
    %19 = vector.shape_cast %18 : vector<1x1x32xf32> to vector<1x32xf32>
    %c1_21 = arith.constant 1 : index
    %c0_22 = arith.constant 0 : index
    %c0_23 = arith.constant 0 : index
    %20 = vector.load %arg6[%c1_21, %c0_22, %c0_23] : memref<7x1x32xf32, #tpu.memory_space<vmem>>, vector<1x1x32xf32>
    %21 = vector.shape_cast %20 : vector<1x1x32xf32> to vector<1x32xf32>
    %c2_24 = arith.constant 2 : index
    %c0_25 = arith.constant 0 : index
    %c0_26 = arith.constant 0 : index
    %22 = vector.load %arg6[%c2_24, %c0_25, %c0_26] : memref<7x1x32xf32, #tpu.memory_space<vmem>>, vector<1x1x32xf32>
    %23 = vector.shape_cast %22 : vector<1x1x32xf32> to vector<1x32xf32>
    %c3_27 = arith.constant 3 : index
    %c0_28 = arith.constant 0 : index
    %c0_29 = arith.constant 0 : index
    %24 = vector.load %arg6[%c3_27, %c0_28, %c0_29] : memref<7x1x32xf32, #tpu.memory_space<vmem>>, vector<1x1x32xf32>
    %25 = vector.shape_cast %24 : vector<1x1x32xf32> to vector<1x32xf32>
    %c4_30 = arith.constant 4 : index
    %c0_31 = arith.constant 0 : index
    %c0_32 = arith.constant 0 : index
    %26 = vector.load %arg6[%c4_30, %c0_31, %c0_32] : memref<7x1x32xf32, #tpu.memory_space<vmem>>, vector<1x1x32xf32>
    %27 = vector.shape_cast %26 : vector<1x1x32xf32> to vector<1x32xf32>
    %c5_33 = arith.constant 5 : index
    %c0_34 = arith.constant 0 : index
    %c0_35 = arith.constant 0 : index
    %28 = vector.load %arg6[%c5_33, %c0_34, %c0_35] : memref<7x1x32xf32, #tpu.memory_space<vmem>>, vector<1x1x32xf32>
    %29 = vector.shape_cast %28 : vector<1x1x32xf32> to vector<1x32xf32>
    %c6_36 = arith.constant 6 : index
    %c0_37 = arith.constant 0 : index
    %c0_38 = arith.constant 0 : index
    %30 = vector.load %arg6[%c6_36, %c0_37, %c0_38] : memref<7x1x32xf32, #tpu.memory_space<vmem>>, vector<1x1x32xf32>
    %31 = vector.shape_cast %30 : vector<1x1x32xf32> to vector<1x32xf32>
    %c0_39 = arith.constant 0 : index
    %c0_40 = arith.constant 0 : index
    %32 = vector.load %arg0[%c0_39, %c0_40] : memref<8x3xf32, #tpu.memory_space<vmem>>, vector<8x3xf32>
    %c0_41 = arith.constant 0 : index
    %c0_42 = arith.constant 0 : index
    %33 = vector.load %arg1[%c0_41, %c0_42] : memref<8x2xf32, #tpu.memory_space<vmem>>, vector<8x2xf32>
    %cst = arith.constant dense<0.000000e+00> : vector<8x32xf32>
    %34 = tpu.matmul %32, %1, %cst {dimension_numbers = #tpu.dot_dimension_numbers<[1], [0], [0], [1], [0, 0, 1, 1], [], []>} : vector<8x3xf32>, vector<3x32xf32>, vector<8x32xf32> -> vector<8x32xf32>
    %cst_43 = arith.constant dense<0.000000e+00> : vector<8x32xf32>
    %35 = tpu.matmul %33, %3, %cst_43 {dimension_numbers = #tpu.dot_dimension_numbers<[1], [0], [0], [1], [0, 0, 1, 1], [], []>} : vector<8x2xf32>, vector<2x32xf32>, vector<8x32xf32> -> vector<8x32xf32>
    %36 = arith.addf %34, %35 : vector<8x32xf32>
    %37 = vector.broadcast %19 : vector<1x32xf32> to vector<8x32xf32>
    %38 = arith.addf %36, %37 : vector<8x32xf32>
    %cst_44 = arith.constant 0.000000e+00 : f32
    %39 = vector.broadcast %cst_44 : f32 to vector<8x32xf32>
    %40 = arith.maximumf %38, %39 : vector<8x32xf32>
    %cst_45 = arith.constant dense<0.000000e+00> : vector<8x32xf32>
    %41 = tpu.matmul %40, %5, %cst_45 {dimension_numbers = #tpu.dot_dimension_numbers<[1], [0], [0], [1], [0, 0, 1, 1], [], []>} : vector<8x32xf32>, vector<32x32xf32>, vector<8x32xf32> -> vector<8x32xf32>
    %42 = vector.broadcast %21 : vector<1x32xf32> to vector<8x32xf32>
    %43 = arith.addf %41, %42 : vector<8x32xf32>
    %cst_46 = arith.constant 0.000000e+00 : f32
    %44 = vector.broadcast %cst_46 : f32 to vector<8x32xf32>
    %45 = arith.maximumf %43, %44 : vector<8x32xf32>
    %cst_47 = arith.constant dense<0.000000e+00> : vector<8x32xf32>
    %46 = tpu.matmul %45, %7, %cst_47 {dimension_numbers = #tpu.dot_dimension_numbers<[1], [0], [0], [1], [0, 0, 1, 1], [], []>} : vector<8x32xf32>, vector<32x32xf32>, vector<8x32xf32> -> vector<8x32xf32>
    %47 = vector.broadcast %23 : vector<1x32xf32> to vector<8x32xf32>
    %48 = arith.addf %46, %47 : vector<8x32xf32>
    %cst_48 = arith.constant dense<0.000000e+00> : vector<32xf32>
    %49 = vector.multi_reduction <add>, %48, %cst_48 [0] : vector<8x32xf32> to vector<32xf32>
    %50 = vector.shape_cast %49 : vector<32xf32> to vector<1x32xf32>
    %cst_49 = arith.constant 8.000000e+00 : f32
    %51 = vector.broadcast %cst_49 : f32 to vector<1x32xf32>
    %52 = arith.divf %50, %51 : vector<1x32xf32>
    %cst_50 = arith.constant dense<0.000000e+00> : vector<1x32xf32>
    %53 = tpu.matmul %52, %9, %cst_50 {dimension_numbers = #tpu.dot_dimension_numbers<[1], [0], [0], [1], [0, 0, 1, 1], [], []>} : vector<1x32xf32>, vector<32x32xf32>, vector<1x32xf32> -> vector<1x32xf32>
    %54 = arith.addf %53, %25 : vector<1x32xf32>
    %c0_51 = arith.constant 0 : index
    %c0_52 = arith.constant 0 : index
    %55 = vector.load %arg2[%c0_51, %c0_52] : memref<8x3xf32, #tpu.memory_space<vmem>>, vector<8x3xf32>
    %c0_53 = arith.constant 0 : index
    %c0_54 = arith.constant 0 : index
    %56 = vector.load %arg3[%c0_53, %c0_54] : memref<8x2xf32, #tpu.memory_space<vmem>>, vector<8x2xf32>
    %cst_55 = arith.constant dense<0.000000e+00> : vector<8x32xf32>
    %57 = tpu.matmul %55, %1, %cst_55 {dimension_numbers = #tpu.dot_dimension_numbers<[1], [0], [0], [1], [0, 0, 1, 1], [], []>} : vector<8x3xf32>, vector<3x32xf32>, vector<8x32xf32> -> vector<8x32xf32>
    %cst_56 = arith.constant dense<0.000000e+00> : vector<8x32xf32>
    %58 = tpu.matmul %56, %3, %cst_56 {dimension_numbers = #tpu.dot_dimension_numbers<[1], [0], [0], [1], [0, 0, 1, 1], [], []>} : vector<8x2xf32>, vector<2x32xf32>, vector<8x32xf32> -> vector<8x32xf32>
    %59 = arith.addf %57, %58 : vector<8x32xf32>
    %60 = vector.broadcast %19 : vector<1x32xf32> to vector<8x32xf32>
    %61 = arith.addf %59, %60 : vector<8x32xf32>
    %cst_57 = arith.constant 0.000000e+00 : f32
    %62 = vector.broadcast %cst_57 : f32 to vector<8x32xf32>
    %63 = arith.maximumf %61, %62 : vector<8x32xf32>
    %cst_58 = arith.constant dense<0.000000e+00> : vector<8x32xf32>
    %64 = tpu.matmul %63, %5, %cst_58 {dimension_numbers = #tpu.dot_dimension_numbers<[1], [0], [0], [1], [0, 0, 1, 1], [], []>} : vector<8x32xf32>, vector<32x32xf32>, vector<8x32xf32> -> vector<8x32xf32>
    %65 = vector.broadcast %21 : vector<1x32xf32> to vector<8x32xf32>
    %66 = arith.addf %64, %65 : vector<8x32xf32>
    %cst_59 = arith.constant 0.000000e+00 : f32
    %67 = vector.broadcast %cst_59 : f32 to vector<8x32xf32>
    %68 = arith.maximumf %66, %67 : vector<8x32xf32>
    %cst_60 = arith.constant dense<0.000000e+00> : vector<8x32xf32>
    %69 = tpu.matmul %68, %7, %cst_60 {dimension_numbers = #tpu.dot_dimension_numbers<[1], [0], [0], [1], [0, 0, 1, 1], [], []>} : vector<8x32xf32>, vector<32x32xf32>, vector<8x32xf32> -> vector<8x32xf32>
    %70 = vector.broadcast %23 : vector<1x32xf32> to vector<8x32xf32>
    %71 = arith.addf %69, %70 : vector<8x32xf32>
    %cst_61 = arith.constant dense<0.000000e+00> : vector<32xf32>
    %72 = vector.multi_reduction <add>, %71, %cst_61 [0] : vector<8x32xf32> to vector<32xf32>
    %73 = vector.shape_cast %72 : vector<32xf32> to vector<1x32xf32>
    %cst_62 = arith.constant 8.000000e+00 : f32
    %74 = vector.broadcast %cst_62 : f32 to vector<1x32xf32>
    %75 = arith.divf %73, %74 : vector<1x32xf32>
    %cst_63 = arith.constant dense<0.000000e+00> : vector<1x32xf32>
    %76 = tpu.matmul %75, %9, %cst_63 {dimension_numbers = #tpu.dot_dimension_numbers<[1], [0], [0], [1], [0, 0, 1, 1], [], []>} : vector<1x32xf32>, vector<32x32xf32>, vector<1x32xf32> -> vector<1x32xf32>
    %77 = arith.addf %76, %25 : vector<1x32xf32>
    %78 = vector.extract_strided_slice %54 {offsets = [0, 0], sizes = [1, 8], strides = [1, 1]} : vector<1x32xf32> to vector<1x8xf32>
    %c0_64 = arith.constant 0 : index
    %c0_65 = arith.constant 0 : index
    %c0_66 = arith.constant 0 : index
    %79 = vector.load %arg8[%c0_64, %c0_65, %c0_66] : memref<2x1x8xf32, #tpu.memory_space<vmem>>, vector<1x1x8xf32>
    %80 = vector.shape_cast %79 : vector<1x1x8xf32> to vector<1x8xf32>
    %81 = vector.shape_cast %78 : vector<1x8xf32> to vector<1x1x8xf32>
    tpu.vector_store %arg8[%c0_64, %c0_65, %c0_66], %81 {strides = array<i32>} : memref<2x1x8xf32, #tpu.memory_space<vmem>>, vector<1x1x8xf32>,
    %82 = vector.extract_strided_slice %77 {offsets = [0, 0], sizes = [1, 8], strides = [1, 1]} : vector<1x32xf32> to vector<1x8xf32>
    %c1_67 = arith.constant 1 : index
    %c0_68 = arith.constant 0 : index
    %c0_69 = arith.constant 0 : index
    %83 = vector.load %arg8[%c1_67, %c0_68, %c0_69] : memref<2x1x8xf32, #tpu.memory_space<vmem>>, vector<1x1x8xf32>
    %84 = vector.shape_cast %83 : vector<1x1x8xf32> to vector<1x8xf32>
    %85 = vector.shape_cast %82 : vector<1x8xf32> to vector<1x1x8xf32>
    tpu.vector_store %arg8[%c1_67, %c0_68, %c0_69], %85 {strides = array<i32>} : memref<2x1x8xf32, #tpu.memory_space<vmem>>, vector<1x1x8xf32>,
    %86 = vector.extract_strided_slice %77 {offsets = [0, 0], sizes = [1, 4], strides = [1, 1]} : vector<1x32xf32> to vector<1x4xf32>
    %87 = vector.extract_strided_slice %77 {offsets = [0, 4], sizes = [1, 4], strides = [1, 1]} : vector<1x32xf32> to vector<1x4xf32>
    %cst_70 = arith.constant 5.000000e-01 : f32
    %88 = vector.broadcast %cst_70 : f32 to vector<1x4xf32>
    %89 = arith.mulf %88, %87 : vector<1x4xf32>
    %90 = math.exp %89 : vector<1x4xf32>
    %c0_71 = arith.constant 0 : index
    %c0_72 = arith.constant 0 : index
    %91 = vector.load %arg4[%c0_71, %c0_72] : memref<1x4xf32, #tpu.memory_space<vmem>>, vector<1x4xf32>
    %92 = arith.mulf %90, %91 : vector<1x4xf32>
    %93 = arith.addf %86, %92 : vector<1x4xf32>
    %c0_73 = arith.constant 0 : index
    %c0_74 = arith.constant 0 : index
    %94 = vector.load %arg2[%c0_73, %c0_74] : memref<8x3xf32, #tpu.memory_space<vmem>>, vector<8x3xf32>
    %cst_75 = arith.constant dense<0.000000e+00> : vector<8x32xf32>
    %95 = tpu.matmul %94, %11, %cst_75 {dimension_numbers = #tpu.dot_dimension_numbers<[1], [0], [0], [1], [0, 0, 1, 1], [], []>} : vector<8x3xf32>, vector<3x32xf32>, vector<8x32xf32> -> vector<8x32xf32>
    %cst_76 = arith.constant dense<0.000000e+00> : vector<1x32xf32>
    %96 = tpu.matmul %93, %13, %cst_76 {dimension_numbers = #tpu.dot_dimension_numbers<[1], [0], [0], [1], [0, 0, 1, 1], [], []>} : vector<1x4xf32>, vector<4x32xf32>, vector<1x32xf32> -> vector<1x32xf32>
    %97 = vector.broadcast %96 : vector<1x32xf32> to vector<8x32xf32>
    %98 = arith.addf %95, %97 : vector<8x32xf32>
    %99 = vector.broadcast %27 : vector<1x32xf32> to vector<8x32xf32>
    %100 = arith.addf %98, %99 : vector<8x32xf32>
    %cst_77 = arith.constant 0.000000e+00 : f32
    %101 = vector.broadcast %cst_77 : f32 to vector<8x32xf32>
    %102 = arith.maximumf %100, %101 : vector<8x32xf32>
    %cst_78 = arith.constant dense<0.000000e+00> : vector<8x32xf32>
    %103 = tpu.matmul %102, %15, %cst_78 {dimension_numbers = #tpu.dot_dimension_numbers<[1], [0], [0], [1], [0, 0, 1, 1], [], []>} : vector<8x32xf32>, vector<32x32xf32>, vector<8x32xf32> -> vector<8x32xf32>
    %104 = vector.broadcast %29 : vector<1x32xf32> to vector<8x32xf32>
    %105 = arith.addf %103, %104 : vector<8x32xf32>
    %cst_79 = arith.constant 0.000000e+00 : f32
    %106 = vector.broadcast %cst_79 : f32 to vector<8x32xf32>
    %107 = arith.maximumf %105, %106 : vector<8x32xf32>
    %cst_80 = arith.constant dense<0.000000e+00> : vector<8x32xf32>
    %108 = tpu.matmul %107, %17, %cst_80 {dimension_numbers = #tpu.dot_dimension_numbers<[1], [0], [0], [1], [0, 0, 1, 1], [], []>} : vector<8x32xf32>, vector<32x32xf32>, vector<8x32xf32> -> vector<8x32xf32>
    %109 = vector.broadcast %31 : vector<1x32xf32> to vector<8x32xf32>
    %110 = arith.addf %108, %109 : vector<8x32xf32>
    %111 = vector.extract_strided_slice %110 {offsets = [0, 0], sizes = [8, 2], strides = [1, 1]} : vector<8x32xf32> to vector<8x2xf32>
    %c0_81 = arith.constant 0 : index
    %c0_82 = arith.constant 0 : index
    %c0_83 = arith.constant 0 : index
    %112 = vector.load %arg7[%c0_81, %c0_82, %c0_83] : memref<1x8x2xf32, #tpu.memory_space<vmem>>, vector<1x8x2xf32>
    %113 = vector.shape_cast %112 : vector<1x8x2xf32> to vector<8x2xf32>
    %114 = vector.shape_cast %111 : vector<8x2xf32> to vector<1x8x2xf32>
    tpu.vector_store %arg7[%c0_81, %c0_82, %c0_83], %114 {strides = array<i32>} : memref<1x8x2xf32, #tpu.memory_space<vmem>>, vector<1x8x2xf32>,
    return
  }
}

</mosaic_0001>

<llo_original>
// kernel: np_forward.1
$region0: #{np_forward.1}
  #allocation0 [shape = 'u32[]', space=smem, size = 0x4, offset = 0x4, fixed_abs, tag = 'smem constant byte address 0x4 - core index']
  #allocation1 [shape = 'u32[144,128]{1,0:T(1,128)}', space=vmem, size = 0x12000, scoped, tag = 'internal scratch']
  %s0 = inlined_call_operand.vmem [shape: f32[8,3], index: 0, kind: input, shape index: {}]
  %s1 = inlined_call_operand.vmem [shape: f32[8,2], index: 1, kind: input, shape index: {}]
  %s2 = inlined_call_operand.vmem [shape: f32[8,3], index: 2, kind: input, shape index: {}]
  %s3 = inlined_call_operand.vmem [shape: f32[8,2], index: 3, kind: input, shape index: {}]
  %s4 = inlined_call_operand.vmem [shape: f32[1,4], index: 4, kind: input, shape index: {}]
  %s5 = inlined_call_operand.hbm [shape: f32[9,32,32], index: 5, kind: input, shape index: {}]
  %s6 = inlined_call_operand.vmem [shape: f32[7,1,32], index: 6, kind: input, shape index: {}]
  %s7 = inlined_call_operand.vmem [shape: f32[1,8,2], index: 7, kind: output, shape index: {0}]
  %s8 = inlined_call_operand.vmem [shape: f32[2,1,8], index: 8, kind: output, shape index: {1}]
  %9 = xla_tuple %s7, %s8
  %s10 = sld [smem:[#allocation0]]
  $region50: #{np_forward.1} parent=0
    _
  %s12 = ssub.s32 1, %s10
  %s13 = scalar_select 0, %s12, %s10
  $region1: #{np_forward.1} parent=0
    #allocation2 [shape = 'u8[147456]{0}', space=vmem, size = 0x24000, scoped, tag = 'input window, operand 5, single buffered']
    #allocation3 [shape = 's32[1]{0}', space=sflag, size = 0x4, scoped, tag = 'scoped memory for np_forward.1']
    %14 = vsyncpa [#allocation3], 0
    // Predicated region
    $region2: #{np_forward.1} parent=1 // pred_check
      _
    $region3: #{np_forward.1} parent=1 // pred_check_branch
      %16 = sbr.rel (0) target = $region5
    $region4: #{np_forward.1} parent=1 // pred_region
      _
    $region5: #{np_forward.1} parent=1 // pred_fallthru
      _
    // Predicated region
    $region6: #{np_forward.1} parent=1 // pred_check
      _
    $region7: #{np_forward.1} parent=1 // pred_check_branch
      %18 = sbr.rel (0) target = $region9
    $region8: #{np_forward.1} parent=1 // pred_region
      _
    $region9: #{np_forward.1} parent=1 // pred_fallthru
      _
    // Predicated region
    $region10: #{np_forward.1} parent=1 // pred_check
      _
    $region11: #{np_forward.1} parent=1 // pred_check_branch
      %20 = sbr.rel (0) target = $region13
    $region12: #{np_forward.1} parent=1 // pred_region
      _
    $region13: #{np_forward.1} parent=1 // pred_fallthru
      _
    // Predicated region
    $region14: #{np_forward.1} parent=1 // pred_check
      _
    $region15: #{np_forward.1} parent=1 // pred_check_branch
      %22 = sbr.rel (0) target = $region17
    $region16: #{np_forward.1} parent=1 // pred_region
      _
    $region17: #{np_forward.1} parent=1 // pred_fallthru
      _
    // Predicated region
    $region18: #{np_forward.1} parent=1 // pred_check
      _
    $region19: #{np_forward.1} parent=1 // pred_check_branch
      %24 = sbr.rel (0) target = $region21
    $region20: #{np_forward.1} parent=1 // pred_region
      _
    $region21: #{np_forward.1} parent=1 // pred_fallthru
      _
    // Predicated region
    $region22: #{np_forward.1} parent=1 // pred_check
      _
    $region23: #{np_forward.1} parent=1 // pred_check_branch
      %26 = sbr.rel (0) target = $region25
    $region24: #{np_forward.1} parent=1 // pred_region
      %s28 = ssub.s32 4608, 4608
      %29 = vsyncadd [#allocation3], %s28
      %s30 = sshll.u32 [#allocation2], 4
      %s31 = int_to_ptr.vmem [resolvable:$true] %s30
      %36 = dma.hbm_to_vmem [thread:$0]  %s5, 4608, %s31, [#allocation3], 128, 128, 8
    $region25: #{np_forward.1} parent=1 // pred_fallthru
      _
    // Predicated region
    $region26: #{np_forward.1} parent=1 // pred_check
      _
    $region27: #{np_forward.1} parent=1 // pred_check_branch
      %38 = sbr.rel (0) target = $region29
    $region28: #{np_forward.1} parent=1 // pred_region
      _
    $region29: #{np_forward.1} parent=1 // pred_fallthru
      _
    // Predicated region
    $region30: #{np_forward.1} parent=1 // pred_check
      _
    $region31: #{np_forward.1} parent=1 // pred_check_branch
      %40 = sbr.rel (0) target = $region33
    $region32: #{np_forward.1} parent=1 // pred_region
      %41 = dma.done [#allocation3], 4608
    $region33: #{np_forward.1} parent=1 // pred_fallthru
      _
    %v42 = vld [vmem:[#allocation2] sm:$0x7]
    %s43 = scalar_lea.vmem [#allocation2], 32
    %v44 = vld [vmem:[%s43] sm:$0x3]
    %s45 = scalar_lea.vmem [#allocation2], 64
    %v46 = vld [vmem:[%s45] sm:$0xff]
    %v47 = vld [vmem:[%s45 + $0x8] sm:$0xff]
    %v48 = vld [vmem:[%s45 + $0x10] sm:$0xff]
    %v49 = vld [vmem:[%s45 + $0x18] sm:$0xff]
    %s50 = scalar_lea.vmem [#allocation2], 96
    %v51 = vld [vmem:[%s50] sm:$0xff]
    %v52 = vld [vmem:[%s50 + $0x8] sm:$0xff]
    %v53 = vld [vmem:[%s50 + $0x10] sm:$0xff]
    %v54 = vld [vmem:[%s50 + $0x18] sm:$0xff]
    %s55 = scalar_lea.vmem [#allocation2], 128
    %v56 = vld [vmem:[%s55] sm:$0xff]
    %v57 = vld [vmem:[%s55 + $0x8] sm:$0xff]
    %v58 = vld [vmem:[%s55 + $0x10] sm:$0xff]
    %v59 = vld [vmem:[%s55 + $0x18] sm:$0xff]
    %s60 = scalar_lea.vmem [#allocation2], 160
    %v61 = vld [vmem:[%s60] sm:$0x7]
    %s62 = scalar_lea.vmem [#allocation2], 192
    %v63 = vld [vmem:[%s62] sm:$0xf]
    %s64 = scalar_lea.vmem [#allocation2], 224
    %v65 = vld [vmem:[%s64] sm:$0xff]
    %v66 = vld [vmem:[%s64 + $0x8] sm:$0xff]
    %v67 = vld [vmem:[%s64 + $0x10] sm:$0xff]
    %v68 = vld [vmem:[%s64 + $0x18] sm:$0xff]
    %s69 = scalar_lea.vmem [#allocation2], 256
    %v70 = vld [vmem:[%s69] sm:$0xff]
    %v71 = vld [vmem:[%s69 + $0x8] sm:$0xff]
    %v72 = vld [vmem:[%s69 + $0x10] sm:$0xff]
    %v73 = vld [vmem:[%s69 + $0x18] sm:$0xff]
    %v74 = vld [vmem:[%s6] sm:$0x1]
    %s75 = scalar_lea.vmem %s6, 1
    %v76 = vld [vmem:[%s75] sm:$0x1]
    %s77 = scalar_lea.vmem %s6, 2
    %v78 = vld [vmem:[%s77] sm:$0x1]
    %s79 = scalar_lea.vmem %s6, 3
    %v80 = vld [vmem:[%s79] sm:$0x1]
    %s81 = scalar_lea.vmem %s6, 4
    %v82 = vld [vmem:[%s81] sm:$0x1]
    %s83 = scalar_lea.vmem %s6, 5
    %v84 = vld [vmem:[%s83] sm:$0x1]
    %s85 = scalar_lea.vmem %s6, 6
    %v86 = vld [vmem:[%s85] sm:$0x1]
    %v87 = vld [vmem:[%s0] sm:$0xff]
    %v88 = vld [vmem:[%s1] sm:$0xff]
    %vm89 = vcmask 15360
    %v91 = vsel %vm89, %v88, 0
    %vm93 = vcmask 1041408
    %v95 = vsel %vm93, %v44, 0
    %97 = vmatprep.subr.mxu0 0.0
    %98 = vmatpush1.msra.mxu0 %v95
    %99 = vmatprep.subr.mxu0 0.0
    %100 = vmatpush1.msra.mxu0 0.0
    %101 = vmatprep.subr.mxu0 0.0
    %102 = vmatpush1.msra.mxu0 0.0
    %103 = vmatprep.subr.mxu0 0.0
    %104 = vmatpush1.msra.mxu0 0.0
    %105 = vmatprep.subr.mxu0 0.0
    %106 = vmatpush1.msra.mxu0 0.0
    %107 = vmatprep.subr.mxu0 0.0
    %108 = vmatpush1.msra.mxu0 0.0
    %109 = vmatprep.subr.mxu0 0.0
    %110 = vmatpush1.msra.mxu0 0.0
    %111 = vmatprep.subr.mxu0 0.0
    %112 = vmatpush1.msra.mxu0 0.0
    %113 = vmatprep.subr.mxu0 0.0
    %114 = vmatpush1.msra.mxu0 0.0
    %115 = vmatprep.subr.mxu0 0.0
    %116 = vmatpush1.msra.mxu0 0.0
    %117 = vmatprep.subr.mxu0 0.0
    %118 = vmatpush1.msra.mxu0 0.0
    %119 = vmatprep.subr.mxu0 0.0
    %120 = vmatpush1.msra.mxu0 0.0
    %121 = vmatprep.subr.mxu0 0.0
    %122 = vmatpush1.msra.mxu0 0.0
    %123 = vmatprep.subr.mxu0 0.0
    %124 = vmatpush1.msra.mxu0 0.0
    %125 = vmatprep.subr.mxu0 0.0
    %126 = vmatpush1.msra.mxu0 0.0
    %127 = vmatprep.subr.mxu0 0.0
    %128 = vmatpush1.msra.mxu0 0.0
    %129 = vmatprep.subr.mxu0 0.0
    %130 = vmatpush1.msra.mxu0 0.0
    %131 = vmatprep.subr.mxu0 0.0
    %132 = vmatpush1.msra.mxu0 0.0
    %133 = vmatprep.subr.mxu0 0.0
    %134 = vmatpush1.msra.mxu0 0.0
    %135 = vmatprep.subr.mxu0 0.0
    %136 = vmatpush1.msra.mxu0 0.0
    %137 = vmatprep.subr.mxu0 0.0
    %138 = vmatpush1.msra.mxu0 0.0
    %139 = vmatprep.subr.mxu0 0.0
    %140 = vmatpush1.msra.mxu0 0.0
    %141 = vmatprep.subr.mxu0 0.0
    %142 = vmatpush1.msra.mxu0 0.0
    %143 = vmatprep.subr.mxu0 0.0
    %144 = vmatpush1.msra.mxu0 0.0
    %145 = vmatprep.subr.mxu0 0.0
    %146 = vmatpush1.msra.mxu0 0.0
    %147 = vmatprep.subr.mxu0 0.0
    %148 = vmatpush1.msra.mxu0 0.0
    %149 = vmatprep.subr.mxu0 0.0
    %150 = vmatpush1.msra.mxu0 0.0
    %151 = vmatprep.subr.mxu0 0.0
    %152 = vmatpush1.msra.mxu0 0.0
    %153 = vmatprep.subr.mxu0 0.0
    %154 = vmatpush1.msra.mxu0 0.0
    %155 = vmatprep.subr.mxu0 0.0
    %156 = vmatpush1.msra.mxu0 0.0
    %157 = vmatprep.subr.mxu0 0.0
    %158 = vmatpush1.msra.mxu0 0.0
    %159 = vmatprep.subr.mxu0 0.0
    %160 = vmatpush1.msra.mxu0 0.0
    %161 = vmatprep.mubr.f32.mxu0 0.0
    %162 = vmatmul.mubr.f32.gmra.mrb[0].mxu0 %v91
    %v163 = vpop.f32.mrb[0].mxu0
    %v164 = vadd.f32 0.0, %v163
    %v165 = vpop.f32.mrb[0].mxu0
    %166 = vdwg.mxu0
    %vm167 = vcmask 23552
    %v169 = vsel %vm167, %v87, 0
    %vm171 = vcmask 1042432
    %v173 = vsel %vm171, %v42, 0
    %175 = vmatprep.subr.mxu0 0.0
    %176 = vmatpush1.msra.mxu0 %v173
    %177 = vmatprep.subr.mxu0 0.0
    %178 = vmatpush1.msra.mxu0 0.0
    %179 = vmatprep.subr.mxu0 0.0
    %180 = vmatpush1.msra.mxu0 0.0
    %181 = vmatprep.subr.mxu0 0.0
    %182 = vmatpush1.msra.mxu0 0.0
    %183 = vmatprep.subr.mxu0 0.0
    %184 = vmatpush1.msra.mxu0 0.0
    %185 = vmatprep.subr.mxu0 0.0
    %186 = vmatpush1.msra.mxu0 0.0
    %187 = vmatprep.subr.mxu0 0.0
    %188 = vmatpush1.msra.mxu0 0.0
    %189 = vmatprep.subr.mxu0 0.0
    %190 = vmatpush1.msra.mxu0 0.0
    %191 = vmatprep.subr.mxu0 0.0
    %192 = vmatpush1.msra.mxu0 0.0
    %193 = vmatprep.subr.mxu0 0.0
    %194 = vmatpush1.msra.mxu0 0.0
    %195 = vmatprep.subr.mxu0 0.0
    %196 = vmatpush1.msra.mxu0 0.0
    %197 = vmatprep.subr.mxu0 0.0
    %198 = vmatpush1.msra.mxu0 0.0
    %199 = vmatprep.subr.mxu0 0.0
    %200 = vmatpush1.msra.mxu0 0.0
    %201 = vmatprep.subr.mxu0 0.0
    %202 = vmatpush1.msra.mxu0 0.0
    %203 = vmatprep.subr.mxu0 0.0
    %204 = vmatpush1.msra.mxu0 0.0
    %205 = vmatprep.subr.mxu0 0.0
    %206 = vmatpush1.msra.mxu0 0.0
    %207 = vmatprep.subr.mxu0 0.0
    %208 = vmatpush1.msra.mxu0 0.0
    %209 = vmatprep.subr.mxu0 0.0
    %210 = vmatpush1.msra.mxu0 0.0
    %211 = vmatprep.subr.mxu0 0.0
    %212 = vmatpush1.msra.mxu0 0.0
    %213 = vmatprep.subr.mxu0 0.0
    %214 = vmatpush1.msra.mxu0 0.0
    %215 = vmatprep.subr.mxu0 0.0
    %216 = vmatpush1.msra.mxu0 0.0
    %217 = vmatprep.subr.mxu0 0.0
    %218 = vmatpush1.msra.mxu0 0.0
    %219 = vmatprep.subr.mxu0 0.0
    %220 = vmatpush1.msra.mxu0 0.0
    %221 = vmatprep.subr.mxu0 0.0
    %222 = vmatpush1.msra.mxu0 0.0
    %223 = vmatprep.subr.mxu0 0.0
    %224 = vmatpush1.msra.mxu0 0.0
    %225 = vmatprep.subr.mxu0 0.0
    %226 = vmatpush1.msra.mxu0 0.0
    %227 = vmatprep.subr.mxu0 0.0
    %228 = vmatpush1.msra.mxu0 0.0
    %229 = vmatprep.subr.mxu0 0.0
    %230 = vmatpush1.msra.mxu0 0.0
    %231 = vmatprep.subr.mxu0 0.0
    %232 = vmatpush1.msra.mxu0 0.0
    %233 = vmatprep.subr.mxu0 0.0
    %234 = vmatpush1.msra.mxu0 0.0
    %235 = vmatprep.subr.mxu0 0.0
    %236 = vmatpush1.msra.mxu0 0.0
    %237 = vmatprep.subr.mxu0 0.0
    %238 = vmatpush1.msra.mxu0 0.0
    %239 = vmatprep.mubr.f32.mxu0 0.0
    %240 = vmatmul.mubr.f32.gmra.mrb[0].mxu0 %v169
    %v241 = vpop.f32.mrb[0].mxu0
    %v242 = vadd.f32 %v164, %v241
    %v243 = vpop.f32.mrb[0].mxu0
    %244 = vdwg.mxu0
    %v246 = vlaneseq
    %v247 = vshrl.u32 %v246, 7
    %v248 = vsub.s32 0, %v247
    %v249 = vrot.slane %v74, %v248
    %v251 = vadd.f32 %v242, %v249
    %v252 = vmax.f32 %v251, 0.0
    %v254 = vlaneseq
    %v255 = vshrl.u32 %v254, 7
    %v256 = vsub.s32 0, %v255
    %v257 = vrot.slane %v76, %v256
    %vm259 = vcmask 261120
    %v261 = vsel %vm259, %v252, 0
    %263 = vmatprep.subr.mxu0 0.0
    %264 = vmatpush1.msra.mxu0 %v46
    %265 = vmatprep.subr.mxu0 0.0
    %266 = vmatpush1.msra.mxu0 %v47
    %267 = vmatprep.subr.mxu0 0.0
    %268 = vmatpush1.msra.mxu0 %v48
    %269 = vmatprep.subr.mxu0 0.0
    %270 = vmatpush1.msra.mxu0 %v49
    %271 = vmatprep.subr.mxu0 0.0
    %272 = vmatpush1.msra.mxu0 0.0
    %273 = vmatprep.subr.mxu0 0.0
    %274 = vmatpush1.msra.mxu0 0.0
    %275 = vmatprep.subr.mxu0 0.0
    %276 = vmatpush1.msra.mxu0 0.0
    %277 = vmatprep.subr.mxu0 0.0
    %278 = vmatpush1.msra.mxu0 0.0
    %279 = vmatprep.subr.mxu0 0.0
    %280 = vmatpush1.msra.mxu0 0.0
    %281 = vmatprep.subr.mxu0 0.0
    %282 = vmatpush1.msra.mxu0 0.0
    %283 = vmatprep.subr.mxu0 0.0
    %284 = vmatpush1.msra.mxu0 0.0
    %285 = vmatprep.subr.mxu0 0.0
    %286 = vmatpush1.msra.mxu0 0.0
    %287 = vmatprep.subr.mxu0 0.0
    %288 = vmatpush1.msra.mxu0 0.0
    %289 = vmatprep.subr.mxu0 0.0
    %290 = vmatpush1.msra.mxu0 0.0
    %291 = vmatprep.subr.mxu0 0.0
    %292 = vmatpush1.msra.mxu0 0.0
    %293 = vmatprep.subr.mxu0 0.0
    %294 = vmatpush1.msra.mxu0 0.0
    %295 = vmatprep.subr.mxu0 0.0
    %296 = vmatpush1.msra.mxu0 0.0
    %297 = vmatprep.subr.mxu0 0.0
    %298 = vmatpush1.msra.mxu0 0.0
    %299 = vmatprep.subr.mxu0 0.0
    %300 = vmatpush1.msra.mxu0 0.0
    %301 = vmatprep.subr.mxu0 0.0
    %302 = vmatpush1.msra.mxu0 0.0
    %303 = vmatprep.subr.mxu0 0.0
    %304 = vmatpush1.msra.mxu0 0.0
    %305 = vmatprep.subr.mxu0 0.0
    %306 = vmatpush1.msra.mxu0 0.0
    %307 = vmatprep.subr.mxu0 0.0
    %308 = vmatpush1.msra.mxu0 0.0
    %309 = vmatprep.subr.mxu0 0.0
    %310 = vmatpush1.msra.mxu0 0.0
    %311 = vmatprep.subr.mxu0 0.0
    %312 = vmatpush1.msra.mxu0 0.0
    %313 = vmatprep.subr.mxu0 0.0
    %314 = vmatpush1.msra.mxu0 0.0
    %315 = vmatprep.subr.mxu0 0.0
    %316 = vmatpush1.msra.mxu0 0.0
    %317 = vmatprep.subr.mxu0 0.0
    %318 = vmatpush1.msra.mxu0 0.0
    %319 = vmatprep.subr.mxu0 0.0
    %320 = vmatpush1.msra.mxu0 0.0
    %321 = vmatprep.subr.mxu0 0.0
    %322 = vmatpush1.msra.mxu0 0.0
    %323 = vmatprep.subr.mxu0 0.0
    %324 = vmatpush1.msra.mxu0 0.0
    %325 = vmatprep.subr.mxu0 0.0
    %326 = vmatpush1.msra.mxu0 0.0
    %327 = vmatprep.mubr.f32.mxu0 0.0
    %328 = vmatmul.mubr.f32.gmra.mrb[0].mxu0 %v261
    %v329 = vpop.f32.mrb[0].mxu0
    %v330 = vadd.f32 %v257, %v329
    %v331 = vpop.f32.mrb[0].mxu0
    %332 = vdwg.mxu0
    %v333 = vmax.f32 %v330, 0.0
    %v335 = vlaneseq
    %v336 = vshrl.u32 %v335, 7
    %v337 = vsub.s32 0, %v336
    %v338 = vrot.slane %v78, %v337
    %v341 = vsel %vm259, %v333, 0
    %343 = vmatprep.subr.mxu0 0.0
    %344 = vmatpush1.msra.mxu0 %v51
    %345 = vmatprep.subr.mxu0 0.0
    %346 = vmatpush1.msra.mxu0 %v52
    %347 = vmatprep.subr.mxu0 0.0
    %348 = vmatpush1.msra.mxu0 %v53
    %349 = vmatprep.subr.mxu0 0.0
    %350 = vmatpush1.msra.mxu0 %v54
    %351 = vmatprep.subr.mxu0 0.0
    %352 = vmatpush1.msra.mxu0 0.0
    %353 = vmatprep.subr.mxu0 0.0
    %354 = vmatpush1.msra.mxu0 0.0
    %355 = vmatprep.subr.mxu0 0.0
    %356 = vmatpush1.msra.mxu0 0.0
    %357 = vmatprep.subr.mxu0 0.0
    %358 = vmatpush1.msra.mxu0 0.0
    %359 = vmatprep.subr.mxu0 0.0
    %360 = vmatpush1.msra.mxu0 0.0
    %361 = vmatprep.subr.mxu0 0.0
    %362 = vmatpush1.msra.mxu0 0.0
    %363 = vmatprep.subr.mxu0 0.0
    %364 = vmatpush1.msra.mxu0 0.0
    %365 = vmatprep.subr.mxu0 0.0
    %366 = vmatpush1.msra.mxu0 0.0
    %367 = vmatprep.subr.mxu0 0.0
    %368 = vmatpush1.msra.mxu0 0.0
    %369 = vmatprep.subr.mxu0 0.0
    %370 = vmatpush1.msra.mxu0 0.0
    %371 = vmatprep.subr.mxu0 0.0
    %372 = vmatpush1.msra.mxu0 0.0
    %373 = vmatprep.subr.mxu0 0.0
    %374 = vmatpush1.msra.mxu0 0.0
    %375 = vmatprep.subr.mxu0 0.0
    %376 = vmatpush1.msra.mxu0 0.0
    %377 = vmatprep.subr.mxu0 0.0
    %378 = vmatpush1.msra.mxu0 0.0
    %379 = vmatprep.subr.mxu0 0.0
    %380 = vmatpush1.msra.mxu0 0.0
    %381 = vmatprep.subr.mxu0 0.0
    %382 = vmatpush1.msra.mxu0 0.0
    %383 = vmatprep.subr.mxu0 0.0
    %384 = vmatpush1.msra.mxu0 0.0
    %385 = vmatprep.subr.mxu0 0.0
    %386 = vmatpush1.msra.mxu0 0.0
    %387 = vmatprep.subr.mxu0 0.0
    %388 = vmatpush1.msra.mxu0 0.0
    %389 = vmatprep.subr.mxu0 0.0
    %390 = vmatpush1.msra.mxu0 0.0
    %391 = vmatprep.subr.mxu0 0.0
    %392 = vmatpush1.msra.mxu0 0.0
    %393 = vmatprep.subr.mxu0 0.0
    %394 = vmatpush1.msra.mxu0 0.0
    %395 = vmatprep.subr.mxu0 0.0
    %396 = vmatpush1.msra.mxu0 0.0
    %397 = vmatprep.subr.mxu0 0.0
    %398 = vmatpush1.msra.mxu0 0.0
    %399 = vmatprep.subr.mxu0 0.0
    %400 = vmatpush1.msra.mxu0 0.0
    %401 = vmatprep.subr.mxu0 0.0
    %402 = vmatpush1.msra.mxu0 0.0
    %403 = vmatprep.subr.mxu0 0.0
    %404 = vmatpush1.msra.mxu0 0.0
    %405 = vmatprep.subr.mxu0 0.0
    %406 = vmatpush1.msra.mxu0 0.0
    %407 = vmatprep.mubr.f32.mxu0 0.0
    %408 = vmatmul.mubr.f32.gmra.mrb[0].mxu0 %v341
    %v409 = vpop.f32.mrb[0].mxu0
    %v410 = vadd.f32 %v338, %v409
    %v411 = vpop.f32.mrb[0].mxu0
    %412 = vdwg.mxu0
    %v413 = vsel %vm259, %v410, 0.0
    %v414 = vrot.slane %v413, 4
    %v415 = vadd.f32 %v413, %v414
    %v416 = vrot.slane %v415, 2
    %v417 = vadd.f32 %v415, %v416
    %v418 = vrot.slane %v417, 1
    %v419 = vadd.f32 %v417, %v418
    %v420 = vrcp.pop 8.0
    %v421 = vmul.f32 %v419, %v420
    %v423 = vsel %vm259, %v421, 0
    %425 = vmatprep.subr.mxu0 0.0
    %426 = vmatpush1.msra.mxu0 %v56
    %427 = vmatprep.subr.mxu0 0.0
    %428 = vmatpush1.msra.mxu0 %v57
    %429 = vmatprep.subr.mxu0 0.0
    %430 = vmatpush1.msra.mxu0 %v58
    %431 = vmatprep.subr.mxu0 0.0
    %432 = vmatpush1.msra.mxu0 %v59
    %433 = vmatprep.subr.mxu0 0.0
    %434 = vmatpush1.msra.mxu0 0.0
    %435 = vmatprep.subr.mxu0 0.0
    %436 = vmatpush1.msra.mxu0 0.0
    %437 = vmatprep.subr.mxu0 0.0
    %438 = vmatpush1.msra.mxu0 0.0
    %439 = vmatprep.subr.mxu0 0.0
    %440 = vmatpush1.msra.mxu0 0.0
    %441 = vmatprep.subr.mxu0 0.0
    %442 = vmatpush1.msra.mxu0 0.0
    %443 = vmatprep.subr.mxu0 0.0
    %444 = vmatpush1.msra.mxu0 0.0
    %445 = vmatprep.subr.mxu0 0.0
    %446 = vmatpush1.msra.mxu0 0.0
    %447 = vmatprep.subr.mxu0 0.0
    %448 = vmatpush1.msra.mxu0 0.0
    %449 = vmatprep.subr.mxu0 0.0
    %450 = vmatpush1.msra.mxu0 0.0
    %451 = vmatprep.subr.mxu0 0.0
    %452 = vmatpush1.msra.mxu0 0.0
    %453 = vmatprep.subr.mxu0 0.0
    %454 = vmatpush1.msra.mxu0 0.0
    %455 = vmatprep.subr.mxu0 0.0
    %456 = vmatpush1.msra.mxu0 0.0
    %457 = vmatprep.subr.mxu0 0.0
    %458 = vmatpush1.msra.mxu0 0.0
    %459 = vmatprep.subr.mxu0 0.0
    %460 = vmatpush1.msra.mxu0 0.0
    %461 = vmatprep.subr.mxu0 0.0
    %462 = vmatpush1.msra.mxu0 0.0
    %463 = vmatprep.subr.mxu0 0.0
    %464 = vmatpush1.msra.mxu0 0.0
    %465 = vmatprep.subr.mxu0 0.0
    %466 = vmatpush1.msra.mxu0 0.0
    %467 = vmatprep.subr.mxu0 0.0
    %468 = vmatpush1.msra.mxu0 0.0
    %469 = vmatprep.subr.mxu0 0.0
    %470 = vmatpush1.msra.mxu0 0.0
    %471 = vmatprep.subr.mxu0 0.0
    %472 = vmatpush1.msra.mxu0 0.0
    %473 = vmatprep.subr.mxu0 0.0
    %474 = vmatpush1.msra.mxu0 0.0
    %475 = vmatprep.subr.mxu0 0.0
    %476 = vmatpush1.msra.mxu0 0.0
    %477 = vmatprep.subr.mxu0 0.0
    %478 = vmatpush1.msra.mxu0 0.0
    %479 = vmatprep.subr.mxu0 0.0
    %480 = vmatpush1.msra.mxu0 0.0
    %481 = vmatprep.subr.mxu0 0.0
    %482 = vmatpush1.msra.mxu0 0.0
    %483 = vmatprep.subr.mxu0 0.0
    %484 = vmatpush1.msra.mxu0 0.0
    %485 = vmatprep.subr.mxu0 0.0
    %486 = vmatpush1.msra.mxu0 0.0
    %487 = vmatprep.subr.mxu0 0.0
    %488 = vmatpush1.msra.mxu0 0.0
    %489 = vmatprep.mubr.f32.mxu0 0.0
    %490 = vmatmul.mubr.f32.gmra.mrb[0].mxu0 %v423
    %v491 = vpop.f32.mrb[0].mxu0
    %v492 = vadd.f32 %v80, %v491
    %v493 = vpop.f32.mrb[0].mxu0
    %494 = vdwg.mxu0
    %v495 = vld [vmem:[%s2] sm:$0xff]
    %v496 = vld [vmem:[%s3] sm:$0xff]
    %v498 = vsel %vm89, %v496, 0
    %500 = vmatprep.subr.mxu0 0.0
    %501 = vmatpush1.msra.mxu0 %v95
    %502 = vmatprep.subr.mxu0 0.0
    %503 = vmatpush1.msra.mxu0 0.0
    %504 = vmatprep.subr.mxu0 0.0
    %505 = vmatpush1.msra.mxu0 0.0
    %506 = vmatprep.subr.mxu0 0.0
    %507 = vmatpush1.msra.mxu0 0.0
    %508 = vmatprep.subr.mxu0 0.0
    %509 = vmatpush1.msra.mxu0 0.0
    %510 = vmatprep.subr.mxu0 0.0
    %511 = vmatpush1.msra.mxu0 0.0
    %512 = vmatprep.subr.mxu0 0.0
    %513 = vmatpush1.msra.mxu0 0.0
    %514 = vmatprep.subr.mxu0 0.0
    %515 = vmatpush1.msra.mxu0 0.0
    %516 = vmatprep.subr.mxu0 0.0
    %517 = vmatpush1.msra.mxu0 0.0
    %518 = vmatprep.subr.mxu0 0.0
    %519 = vmatpush1.msra.mxu0 0.0
    %520 = vmatprep.subr.mxu0 0.0
    %521 = vmatpush1.msra.mxu0 0.0
    %522 = vmatprep.subr.mxu0 0.0
    %523 = vmatpush1.msra.mxu0 0.0
    %524 = vmatprep.subr.mxu0 0.0
    %525 = vmatpush1.msra.mxu0 0.0
    %526 = vmatprep.subr.mxu0 0.0
    %527 = vmatpush1.msra.mxu0 0.0
    %528 = vmatprep.subr.mxu0 0.0
    %529 = vmatpush1.msra.mxu0 0.0
    %530 = vmatprep.subr.mxu0 0.0
    %531 = vmatpush1.msra.mxu0 0.0
    %532 = vmatprep.subr.mxu0 0.0
    %533 = vmatpush1.msra.mxu0 0.0
    %534 = vmatprep.subr.mxu0 0.0
    %535 = vmatpush1.msra.mxu0 0.0
    %536 = vmatprep.subr.mxu0 0.0
    %537 = vmatpush1.msra.mxu0 0.0
    %538 = vmatprep.subr.mxu0 0.0
    %539 = vmatpush1.msra.mxu0 0.0
    %540 = vmatprep.subr.mxu0 0.0
    %541 = vmatpush1.msra.mxu0 0.0
    %542 = vmatprep.subr.mxu0 0.0
    %543 = vmatpush1.msra.mxu0 0.0
    %544 = vmatprep.subr.mxu0 0.0
    %545 = vmatpush1.msra.mxu0 0.0
    %546 = vmatprep.subr.mxu0 0.0
    %547 = vmatpush1.msra.mxu0 0.0
    %548 = vmatprep.subr.mxu0 0.0
    %549 = vmatpush1.msra.mxu0 0.0
    %550 = vmatprep.subr.mxu0 0.0
    %551 = vmatpush1.msra.mxu0 0.0
    %552 = vmatprep.subr.mxu0 0.0
    %553 = vmatpush1.msra.mxu0 0.0
    %554 = vmatprep.subr.mxu0 0.0
    %555 = vmatpush1.msra.mxu0 0.0
    %556 = vmatprep.subr.mxu0 0.0
    %557 = vmatpush1.msra.mxu0 0.0
    %558 = vmatprep.subr.mxu0 0.0
    %559 = vmatpush1.msra.mxu0 0.0
    %560 = vmatprep.subr.mxu0 0.0
    %561 = vmatpush1.msra.mxu0 0.0
    %562 = vmatprep.subr.mxu0 0.0
    %563 = vmatpush1.msra.mxu0 0.0
    %564 = vmatprep.mubr.f32.mxu0 0.0
    %565 = vmatmul.mubr.f32.gmra.mrb[0].mxu0 %v498
    %v566 = vpop.f32.mrb[0].mxu0
    %v567 = vadd.f32 0.0, %v566
    %v568 = vpop.f32.mrb[0].mxu0
    %569 = vdwg.mxu0
    %v571 = vsel %vm167, %v495, 0
    %573 = vmatprep.subr.mxu0 0.0
    %574 = vmatpush1.msra.mxu0 %v173
    %575 = vmatprep.subr.mxu0 0.0
    %576 = vmatpush1.msra.mxu0 0.0
    %577 = vmatprep.subr.mxu0 0.0
    %578 = vmatpush1.msra.mxu0 0.0
    %579 = vmatprep.subr.mxu0 0.0
    %580 = vmatpush1.msra.mxu0 0.0
    %581 = vmatprep.subr.mxu0 0.0
    %582 = vmatpush1.msra.mxu0 0.0
    %583 = vmatprep.subr.mxu0 0.0
    %584 = vmatpush1.msra.mxu0 0.0
    %585 = vmatprep.subr.mxu0 0.0
    %586 = vmatpush1.msra.mxu0 0.0
    %587 = vmatprep.subr.mxu0 0.0
    %588 = vmatpush1.msra.mxu0 0.0
    %589 = vmatprep.subr.mxu0 0.0
    %590 = vmatpush1.msra.mxu0 0.0
    %591 = vmatprep.subr.mxu0 0.0
    %592 = vmatpush1.msra.mxu0 0.0
    %593 = vmatprep.subr.mxu0 0.0
    %594 = vmatpush1.msra.mxu0 0.0
    %595 = vmatprep.subr.mxu0 0.0
    %596 = vmatpush1.msra.mxu0 0.0
    %597 = vmatprep.subr.mxu0 0.0
    %598 = vmatpush1.msra.mxu0 0.0
    %599 = vmatprep.subr.mxu0 0.0
    %600 = vmatpush1.msra.mxu0 0.0
    %601 = vmatprep.subr.mxu0 0.0
    %602 = vmatpush1.msra.mxu0 0.0
    %603 = vmatprep.subr.mxu0 0.0
    %604 = vmatpush1.msra.mxu0 0.0
    %605 = vmatprep.subr.mxu0 0.0
    %606 = vmatpush1.msra.mxu0 0.0
    %607 = vmatprep.subr.mxu0 0.0
    %608 = vmatpush1.msra.mxu0 0.0
    %609 = vmatprep.subr.mxu0 0.0
    %610 = vmatpush1.msra.mxu0 0.0
    %611 = vmatprep.subr.mxu0 0.0
    %612 = vmatpush1.msra.mxu0 0.0
    %613 = vmatprep.subr.mxu0 0.0
    %614 = vmatpush1.msra.mxu0 0.0
    %615 = vmatprep.subr.mxu0 0.0
    %616 = vmatpush1.msra.mxu0 0.0
    %617 = vmatprep.subr.mxu0 0.0
    %618 = vmatpush1.msra.mxu0 0.0
    %619 = vmatprep.subr.mxu0 0.0
    %620 = vmatpush1.msra.mxu0 0.0
    %621 = vmatprep.subr.mxu0 0.0
    %622 = vmatpush1.msra.mxu0 0.0
    %623 = vmatprep.subr.mxu0 0.0
    %624 = vmatpush1.msra.mxu0 0.0
    %625 = vmatprep.subr.mxu0 0.0
    %626 = vmatpush1.msra.mxu0 0.0
    %627 = vmatprep.subr.mxu0 0.0
    %628 = vmatpush1.msra.mxu0 0.0
    %629 = vmatprep.subr.mxu0 0.0
    %630 = vmatpush1.msra.mxu0 0.0
    %631 = vmatprep.subr.mxu0 0.0
    %632 = vmatpush1.msra.mxu0 0.0
    %633 = vmatprep.subr.mxu0 0.0
    %634 = vmatpush1.msra.mxu0 0.0
    %635 = vmatprep.subr.mxu0 0.0
    %636 = vmatpush1.msra.mxu0 0.0
    %637 = vmatprep.mubr.f32.mxu0 0.0
    %638 = vmatmul.mubr.f32.gmra.mrb[0].mxu0 %v571
    %v639 = vpop.f32.mrb[0].mxu0
    %v640 = vadd.f32 %v567, %v639
    %v641 = vpop.f32.mrb[0].mxu0
    %642 = vdwg.mxu0
    %v643 = vadd.f32 %v640, %v249
    %v644 = vmax.f32 %v643, 0.0
    %v646 = vsel %vm259, %v644, 0
    %648 = vmatprep.subr.mxu0 0.0
    %649 = vmatpush1.msra.mxu0 %v46
    %650 = vmatprep.subr.mxu0 0.0
    %651 = vmatpush1.msra.mxu0 %v47
    %652 = vmatprep.subr.mxu0 0.0
    %653 = vmatpush1.msra.mxu0 %v48
    %654 = vmatprep.subr.mxu0 0.0
    %655 = vmatpush1.msra.mxu0 %v49
    %656 = vmatprep.subr.mxu0 0.0
    %657 = vmatpush1.msra.mxu0 0.0
    %658 = vmatprep.subr.mxu0 0.0
    %659 = vmatpush1.msra.mxu0 0.0
    %660 = vmatprep.subr.mxu0 0.0
    %661 = vmatpush1.msra.mxu0 0.0
    %662 = vmatprep.subr.mxu0 0.0
    %663 = vmatpush1.msra.mxu0 0.0
    %664 = vmatprep.subr.mxu0 0.0
    %665 = vmatpush1.msra.mxu0 0.0
    %666 = vmatprep.subr.mxu0 0.0
    %667 = vmatpush1.msra.mxu0 0.0
    %668 = vmatprep.subr.mxu0 0.0
    %669 = vmatpush1.msra.mxu0 0.0
    %670 = vmatprep.subr.mxu0 0.0
    %671 = vmatpush1.msra.mxu0 0.0
    %672 = vmatprep.subr.mxu0 0.0
    %673 = vmatpush1.msra.mxu0 0.0
    %674 = vmatprep.subr.mxu0 0.0
    %675 = vmatpush1.msra.mxu0 0.0
    %676 = vmatprep.subr.mxu0 0.0
    %677 = vmatpush1.msra.mxu0 0.0
    %678 = vmatprep.subr.mxu0 0.0
    %679 = vmatpush1.msra.mxu0 0.0
    %680 = vmatprep.subr.mxu0 0.0
    %681 = vmatpush1.msra.mxu0 0.0
    %682 = vmatprep.subr.mxu0 0.0
    %683 = vmatpush1.msra.mxu0 0.0
    %684 = vmatprep.subr.mxu0 0.0
    %685 = vmatpush1.msra.mxu0 0.0
    %686 = vmatprep.subr.mxu0 0.0
    %687 = vmatpush1.msra.mxu0 0.0
    %688 = vmatprep.subr.mxu0 0.0
    %689 = vmatpush1.msra.mxu0 0.0
    %690 = vmatprep.subr.mxu0 0.0
    %691 = vmatpush1.msra.mxu0 0.0
    %692 = vmatprep.subr.mxu0 0.0
    %693 = vmatpush1.msra.mxu0 0.0
    %694 = vmatprep.subr.mxu0 0.0
    %695 = vmatpush1.msra.mxu0 0.0
    %696 = vmatprep.subr.mxu0 0.0
    %697 = vmatpush1.msra.mxu0 0.0
    %698 = vmatprep.subr.mxu0 0.0
    %699 = vmatpush1.msra.mxu0 0.0
    %700 = vmatprep.subr.mxu0 0.0
    %701 = vmatpush1.msra.mxu0 0.0
    %702 = vmatprep.subr.mxu0 0.0
    %703 = vmatpush1.msra.mxu0 0.0
    %704 = vmatprep.subr.mxu0 0.0
    %705 = vmatpush1.msra.mxu0 0.0
    %706 = vmatprep.subr.mxu0 0.0
    %707 = vmatpush1.msra.mxu0 0.0
    %708 = vmatprep.subr.mxu0 0.0
    %709 = vmatpush1.msra.mxu0 0.0
    %710 = vmatprep.subr.mxu0 0.0
    %711 = vmatpush1.msra.mxu0 0.0
    %712 = vmatprep.mubr.f32.mxu0 0.0
    %713 = vmatmul.mubr.f32.gmra.mrb[0].mxu0 %v646
    %v714 = vpop.f32.mrb[0].mxu0
    %v715 = vadd.f32 %v257, %v714
    %v716 = vpop.f32.mrb[0].mxu0
    %717 = vdwg.mxu0
    %v718 = vmax.f32 %v715, 0.0
    %v720 = vsel %vm259, %v718, 0
    %722 = vmatprep.subr.mxu0 0.0
    %723 = vmatpush1.msra.mxu0 %v51
    %724 = vmatprep.subr.mxu0 0.0
    %725 = vmatpush1.msra.mxu0 %v52
    %726 = vmatprep.subr.mxu0 0.0
    %727 = vmatpush1.msra.mxu0 %v53
    %728 = vmatprep.subr.mxu0 0.0
    %729 = vmatpush1.msra.mxu0 %v54
    %730 = vmatprep.subr.mxu0 0.0
    %731 = vmatpush1.msra.mxu0 0.0
    %732 = vmatprep.subr.mxu0 0.0
    %733 = vmatpush1.msra.mxu0 0.0
    %734 = vmatprep.subr.mxu0 0.0
    %735 = vmatpush1.msra.mxu0 0.0
    %736 = vmatprep.subr.mxu0 0.0
    %737 = vmatpush1.msra.mxu0 0.0
    %738 = vmatprep.subr.mxu0 0.0
    %739 = vmatpush1.msra.mxu0 0.0
    %740 = vmatprep.subr.mxu0 0.0
    %741 = vmatpush1.msra.mxu0 0.0
    %742 = vmatprep.subr.mxu0 0.0
    %743 = vmatpush1.msra.mxu0 0.0
    %744 = vmatprep.subr.mxu0 0.0
    %745 = vmatpush1.msra.mxu0 0.0
    %746 = vmatprep.subr.mxu0 0.0
    %747 = vmatpush1.msra.mxu0 0.0
    %748 = vmatprep.subr.mxu0 0.0
    %749 = vmatpush1.msra.mxu0 0.0
    %750 = vmatprep.subr.mxu0 0.0
    %751 = vmatpush1.msra.mxu0 0.0
    %752 = vmatprep.subr.mxu0 0.0
    %753 = vmatpush1.msra.mxu0 0.0
    %754 = vmatprep.subr.mxu0 0.0
    %755 = vmatpush1.msra.mxu0 0.0
    %756 = vmatprep.subr.mxu0 0.0
    %757 = vmatpush1.msra.mxu0 0.0
    %758 = vmatprep.subr.mxu0 0.0
    %759 = vmatpush1.msra.mxu0 0.0
    %760 = vmatprep.subr.mxu0 0.0
    %761 = vmatpush1.msra.mxu0 0.0
    %762 = vmatprep.subr.mxu0 0.0
    %763 = vmatpush1.msra.mxu0 0.0
    %764 = vmatprep.subr.mxu0 0.0
    %765 = vmatpush1.msra.mxu0 0.0
    %766 = vmatprep.subr.mxu0 0.0
    %767 = vmatpush1.msra.mxu0 0.0
    %768 = vmatprep.subr.mxu0 0.0
    %769 = vmatpush1.msra.mxu0 0.0
    %770 = vmatprep.subr.mxu0 0.0
    %771 = vmatpush1.msra.mxu0 0.0
    %772 = vmatprep.subr.mxu0 0.0
    %773 = vmatpush1.msra.mxu0 0.0
    %774 = vmatprep.subr.mxu0 0.0
    %775 = vmatpush1.msra.mxu0 0.0
    %776 = vmatprep.subr.mxu0 0.0
    %777 = vmatpush1.msra.mxu0 0.0
    %778 = vmatprep.subr.mxu0 0.0
    %779 = vmatpush1.msra.mxu0 0.0
    %780 = vmatprep.subr.mxu0 0.0
    %781 = vmatpush1.msra.mxu0 0.0
    %782 = vmatprep.subr.mxu0 0.0
    %783 = vmatpush1.msra.mxu0 0.0
    %784 = vmatprep.subr.mxu0 0.0
    %785 = vmatpush1.msra.mxu0 0.0
    %786 = vmatprep.mubr.f32.mxu0 0.0
    %787 = vmatmul.mubr.f32.gmra.mrb[0].mxu0 %v720
    %v788 = vpop.f32.mrb[0].mxu0
    %v789 = vadd.f32 %v338, %v788
    %v790 = vpop.f32.mrb[0].mxu0
    %791 = vdwg.mxu0
    %v792 = vsel %vm259, %v789, 0.0
    %v793 = vrot.slane %v792, 4
    %v794 = vadd.f32 %v792, %v793
    %v795 = vrot.slane %v794, 2
    %v796 = vadd.f32 %v794, %v795
    %v797 = vrot.slane %v796, 1
    %v798 = vadd.f32 %v796, %v797
    %v799 = vmul.f32 %v798, %v420
    %v801 = vsel %vm259, %v799, 0
    %803 = vmatprep.subr.mxu0 0.0
    %804 = vmatpush1.msra.mxu0 %v56
    %805 = vmatprep.subr.mxu0 0.0
    %806 = vmatpush1.msra.mxu0 %v57
    %807 = vmatprep.subr.mxu0 0.0
    %808 = vmatpush1.msra.mxu0 %v58
    %809 = vmatprep.subr.mxu0 0.0
    %810 = vmatpush1.msra.mxu0 %v59
    %811 = vmatprep.subr.mxu0 0.0
    %812 = vmatpush1.msra.mxu0 0.0
    %813 = vmatprep.subr.mxu0 0.0
    %814 = vmatpush1.msra.mxu0 0.0
    %815 = vmatprep.subr.mxu0 0.0
    %816 = vmatpush1.msra.mxu0 0.0
    %817 = vmatprep.subr.mxu0 0.0
    %818 = vmatpush1.msra.mxu0 0.0
    %819 = vmatprep.subr.mxu0 0.0
    %820 = vmatpush1.msra.mxu0 0.0
    %821 = vmatprep.subr.mxu0 0.0
    %822 = vmatpush1.msra.mxu0 0.0
    %823 = vmatprep.subr.mxu0 0.0
    %824 = vmatpush1.msra.mxu0 0.0
    %825 = vmatprep.subr.mxu0 0.0
    %826 = vmatpush1.msra.mxu0 0.0
    %827 = vmatprep.subr.mxu0 0.0
    %828 = vmatpush1.msra.mxu0 0.0
    %829 = vmatprep.subr.mxu0 0.0
    %830 = vmatpush1.msra.mxu0 0.0
    %831 = vmatprep.subr.mxu0 0.0
    %832 = vmatpush1.msra.mxu0 0.0
    %833 = vmatprep.subr.mxu0 0.0
    %834 = vmatpush1.msra.mxu0 0.0
    %835 = vmatprep.subr.mxu0 0.0
    %836 = vmatpush1.msra.mxu0 0.0
    %837 = vmatprep.subr.mxu0 0.0
    %838 = vmatpush1.msra.mxu0 0.0
    %839 = vmatprep.subr.mxu0 0.0
    %840 = vmatpush1.msra.mxu0 0.0
    %841 = vmatprep.subr.mxu0 0.0
    %842 = vmatpush1.msra.mxu0 0.0
    %843 = vmatprep.subr.mxu0 0.0
    %844 = vmatpush1.msra.mxu0 0.0
    %845 = vmatprep.subr.mxu0 0.0
    %846 = vmatpush1.msra.mxu0 0.0
    %847 = vmatprep.subr.mxu0 0.0
    %848 = vmatpush1.msra.mxu0 0.0
    %849 = vmatprep.subr.mxu0 0.0
    %850 = vmatpush1.msra.mxu0 0.0
    %851 = vmatprep.subr.mxu0 0.0
    %852 = vmatpush1.msra.mxu0 0.0
    %853 = vmatprep.subr.mxu0 0.0
    %854 = vmatpush1.msra.mxu0 0.0
    %855 = vmatprep.subr.mxu0 0.0
    %856 = vmatpush1.msra.mxu0 0.0
    %857 = vmatprep.subr.mxu0 0.0
    %858 = vmatpush1.msra.mxu0 0.0
    %859 = vmatprep.subr.mxu0 0.0
    %860 = vmatpush1.msra.mxu0 0.0
    %861 = vmatprep.subr.mxu0 0.0
    %862 = vmatpush1.msra.mxu0 0.0
    %863 = vmatprep.subr.mxu0 0.0
    %864 = vmatpush1.msra.mxu0 0.0
    %865 = vmatprep.subr.mxu0 0.0
    %866 = vmatpush1.msra.mxu0 0.0
    %867 = vmatprep.mubr.f32.mxu0 0.0
    %868 = vmatmul.mubr.f32.gmra.mrb[0].mxu0 %v801
    %v869 = vpop.f32.mrb[0].mxu0
    %v870 = vadd.f32 %v80, %v869
    %v871 = vpop.f32.mrb[0].mxu0
    %872 = vdwg.mxu0
    %vm873 = vcmask 57344
    %874 = vst.msk [vmem:[%s8] sm:$0x1] %vm873, %v492
    %s875 = scalar_lea.vmem %s8, 1
    %876 = vst.msk [vmem:[%s875] sm:$0x1] %vm873, %v870
    %v877 = vmul.f32 %v870, 0.5
    %v878 = vmul.f32 %v877, 1.442695
    %v879 = vpow.pop %v878
    %v880 = vld [vmem:[%s4] sm:$0x1]
    %v882 = vlaneseq
    %v883 = vshrl.u32 %v882, 7
    %v884 = vsub.s32 0, %v883
    %v885 = vrot.slane %v880, %v884
    %886 = vrot.lane.b32.xlu0 %v885, 4
    %v887 = vpop.permute.xlu0 %886
    %v889 = vmul.f32 %v879, %v887
    %891 = vrot.lane.b32.xlu0 %v889, 124
    %v892 = vpop.permute.xlu0 %891
    %v894 = vadd.f32 %v870, %v892
    %v895 = vld [vmem:[%s2] sm:$0xff]
    %vm896 = vcmask 31744
    %v898 = vsel %vm896, %v894, 0
    %vm900 = vcmask 1043456
    %v902 = vsel %vm900, %v63, 0
    %904 = vmatprep.subr.mxu0 0.0
    %905 = vmatpush1.msra.mxu0 %v902
    %906 = vmatprep.subr.mxu0 0.0
    %907 = vmatpush1.msra.mxu0 0.0
    %908 = vmatprep.subr.mxu0 0.0
    %909 = vmatpush1.msra.mxu0 0.0
    %910 = vmatprep.subr.mxu0 0.0
    %911 = vmatpush1.msra.mxu0 0.0
    %912 = vmatprep.subr.mxu0 0.0
    %913 = vmatpush1.msra.mxu0 0.0
    %914 = vmatprep.subr.mxu0 0.0
    %915 = vmatpush1.msra.mxu0 0.0
    %916 = vmatprep.subr.mxu0 0.0
    %917 = vmatpush1.msra.mxu0 0.0
    %918 = vmatprep.subr.mxu0 0.0
    %919 = vmatpush1.msra.mxu0 0.0
    %920 = vmatprep.subr.mxu0 0.0
    %921 = vmatpush1.msra.mxu0 0.0
    %922 = vmatprep.subr.mxu0 0.0
    %923 = vmatpush1.msra.mxu0 0.0
    %924 = vmatprep.subr.mxu0 0.0
    %925 = vmatpush1.msra.mxu0 0.0
    %926 = vmatprep.subr.mxu0 0.0
    %927 = vmatpush1.msra.mxu0 0.0
    %928 = vmatprep.subr.mxu0 0.0
    %929 = vmatpush1.msra.mxu0 0.0
    %930 = vmatprep.subr.mxu0 0.0
    %931 = vmatpush1.msra.mxu0 0.0
    %932 = vmatprep.subr.mxu0 0.0
    %933 = vmatpush1.msra.mxu0 0.0
    %934 = vmatprep.subr.mxu0 0.0
    %935 = vmatpush1.msra.mxu0 0.0
    %936 = vmatprep.subr.mxu0 0.0
    %937 = vmatpush1.msra.mxu0 0.0
    %938 = vmatprep.subr.mxu0 0.0
    %939 = vmatpush1.msra.mxu0 0.0
    %940 = vmatprep.subr.mxu0 0.0
    %941 = vmatpush1.msra.mxu0 0.0
    %942 = vmatprep.subr.mxu0 0.0
    %943 = vmatpush1.msra.mxu0 0.0
    %944 = vmatprep.subr.mxu0 0.0
    %945 = vmatpush1.msra.mxu0 0.0
    %946 = vmatprep.subr.mxu0 0.0
    %947 = vmatpush1.msra.mxu0 0.0
    %948 = vmatprep.subr.mxu0 0.0
    %949 = vmatpush1.msra.mxu0 0.0
    %950 = vmatprep.subr.mxu0 0.0
    %951 = vmatpush1.msra.mxu0 0.0
    %952 = vmatprep.subr.mxu0 0.0
    %953 = vmatpush1.msra.mxu0 0.0
    %954 = vmatprep.subr.mxu0 0.0
    %955 = vmatpush1.msra.mxu0 0.0
    %956 = vmatprep.subr.mxu0 0.0
    %957 = vmatpush1.msra.mxu0 0.0
    %958 = vmatprep.subr.mxu0 0.0
    %959 = vmatpush1.msra.mxu0 0.0
    %960 = vmatprep.subr.mxu0 0.0
    %961 = vmatpush1.msra.mxu0 0.0
    %962 = vmatprep.subr.mxu0 0.0
    %963 = vmatpush1.msra.mxu0 0.0
    %964 = vmatprep.subr.mxu0 0.0
    %965 = vmatpush1.msra.mxu0 0.0
    %966 = vmatprep.subr.mxu0 0.0
    %967 = vmatpush1.msra.mxu0 0.0
    %968 = vmatprep.mubr.f32.mxu0 0.0
    %969 = vmatmul.mubr.f32.gmra.mrb[0].mxu0 %v898
    %v970 = vpop.f32.mrb[0].mxu0
    %v971 = vadd.f32 0.0, %v970
    %v972 = vpop.f32.mrb[0].mxu0
    %973 = vdwg.mxu0
    %v974 = vlaneseq
    %v975 = vshrl.u32 %v974, 7
    %v976 = vsub.s32 0, %v975
    %v977 = vrot.slane %v971, %v976
    %v979 = vsel %vm167, %v895, 0
    %v982 = vsel %vm171, %v61, 0
    %984 = vmatprep.subr.mxu0 0.0
    %985 = vmatpush1.msra.mxu0 %v982
    %986 = vmatprep.subr.mxu0 0.0
    %987 = vmatpush1.msra.mxu0 0.0
    %988 = vmatprep.subr.mxu0 0.0
    %989 = vmatpush1.msra.mxu0 0.0
    %990 = vmatprep.subr.mxu0 0.0
    %991 = vmatpush1.msra.mxu0 0.0
    %992 = vmatprep.subr.mxu0 0.0
    %993 = vmatpush1.msra.mxu0 0.0
    %994 = vmatprep.subr.mxu0 0.0
    %995 = vmatpush1.msra.mxu0 0.0
    %996 = vmatprep.subr.mxu0 0.0
    %997 = vmatpush1.msra.mxu0 0.0
    %998 = vmatprep.subr.mxu0 0.0
    %999 = vmatpush1.msra.mxu0 0.0
    %1000 = vmatprep.subr.mxu0 0.0
    %1001 = vmatpush1.msra.mxu0 0.0
    %1002 = vmatprep.subr.mxu0 0.0
    %1003 = vmatpush1.msra.mxu0 0.0
    %1004 = vmatprep.subr.mxu0 0.0
    %1005 = vmatpush1.msra.mxu0 0.0
    %1006 = vmatprep.subr.mxu0 0.0
    %1007 = vmatpush1.msra.mxu0 0.0
    %1008 = vmatprep.subr.mxu0 0.0
    %1009 = vmatpush1.msra.mxu0 0.0
    %1010 = vmatprep.subr.mxu0 0.0
    %1011 = vmatpush1.msra.mxu0 0.0
    %1012 = vmatprep.subr.mxu0 0.0
    %1013 = vmatpush1.msra.mxu0 0.0
    %1014 = vmatprep.subr.mxu0 0.0
    %1015 = vmatpush1.msra.mxu0 0.0
    %1016 = vmatprep.subr.mxu0 0.0
    %1017 = vmatpush1.msra.mxu0 0.0
    %1018 = vmatprep.subr.mxu0 0.0
    %1019 = vmatpush1.msra.mxu0 0.0
    %1020 = vmatprep.subr.mxu0 0.0
    %1021 = vmatpush1.msra.mxu0 0.0
    %1022 = vmatprep.subr.mxu0 0.0
    %1023 = vmatpush1.msra.mxu0 0.0
    %1024 = vmatprep.subr.mxu0 0.0
    %1025 = vmatpush1.msra.mxu0 0.0
    %1026 = vmatprep.subr.mxu0 0.0
    %1027 = vmatpush1.msra.mxu0 0.0
    %1028 = vmatprep.subr.mxu0 0.0
    %1029 = vmatpush1.msra.mxu0 0.0
    %1030 = vmatprep.subr.mxu0 0.0
    %1031 = vmatpush1.msra.mxu0 0.0
    %1032 = vmatprep.subr.mxu0 0.0
    %1033 = vmatpush1.msra.mxu0 0.0
    %1034 = vmatprep.subr.mxu0 0.0
    %1035 = vmatpush1.msra.mxu0 0.0
    %1036 = vmatprep.subr.mxu0 0.0
    %1037 = vmatpush1.msra.mxu0 0.0
    %1038 = vmatprep.subr.mxu0 0.0
    %1039 = vmatpush1.msra.mxu0 0.0
    %1040 = vmatprep.subr.mxu0 0.0
    %1041 = vmatpush1.msra.mxu0 0.0
    %1042 = vmatprep.subr.mxu0 0.0
    %1043 = vmatpush1.msra.mxu0 0.0
    %1044 = vmatprep.subr.mxu0 0.0
    %1045 = vmatpush1.msra.mxu0 0.0
    %1046 = vmatprep.subr.mxu0 0.0
    %1047 = vmatpush1.msra.mxu0 0.0
    %1048 = vmatprep.mubr.f32.mxu0 0.0
    %1049 = vmatmul.mubr.f32.gmra.mrb[0].mxu0 %v979
    %v1050 = vpop.f32.mrb[0].mxu0
    %v1051 = vadd.f32 %v977, %v1050
    %v1052 = vpop.f32.mrb[0].mxu0
    %1053 = vdwg.mxu0
    %v1055 = vlaneseq
    %v1056 = vshrl.u32 %v1055, 7
    %v1057 = vsub.s32 0, %v1056
    %v1058 = vrot.slane %v82, %v1057
    %v1060 = vadd.f32 %v1051, %v1058
    %v1061 = vmax.f32 %v1060, 0.0
    %v1063 = vlaneseq
    %v1064 = vshrl.u32 %v1063, 7
    %v1065 = vsub.s32 0, %v1064
    %v1066 = vrot.slane %v84, %v1065
    %v1069 = vsel %vm259, %v1061, 0
    %1071 = vmatprep.subr.mxu0 0.0
    %1072 = vmatpush1.msra.mxu0 %v65
    %1073 = vmatprep.subr.mxu0 0.0
    %1074 = vmatpush1.msra.mxu0 %v66
    %1075 = vmatprep.subr.mxu0 0.0
    %1076 = vmatpush1.msra.mxu0 %v67
    %1077 = vmatprep.subr.mxu0 0.0
    %1078 = vmatpush1.msra.mxu0 %v68
    %1079 = vmatprep.subr.mxu0 0.0
    %1080 = vmatpush1.msra.mxu0 0.0
    %1081 = vmatprep.subr.mxu0 0.0
    %1082 = vmatpush1.msra.mxu0 0.0
    %1083 = vmatprep.subr.mxu0 0.0
    %1084 = vmatpush1.msra.mxu0 0.0
    %1085 = vmatprep.subr.mxu0 0.0
    %1086 = vmatpush1.msra.mxu0 0.0
    %1087 = vmatprep.subr.mxu0 0.0
    %1088 = vmatpush1.msra.mxu0 0.0
    %1089 = vmatprep.subr.mxu0 0.0
    %1090 = vmatpush1.msra.mxu0 0.0
    %1091 = vmatprep.subr.mxu0 0.0
    %1092 = vmatpush1.msra.mxu0 0.0
    %1093 = vmatprep.subr.mxu0 0.0
    %1094 = vmatpush1.msra.mxu0 0.0
    %1095 = vmatprep.subr.mxu0 0.0
    %1096 = vmatpush1.msra.mxu0 0.0
    %1097 = vmatprep.subr.mxu0 0.0
    %1098 = vmatpush1.msra.mxu0 0.0
    %1099 = vmatprep.subr.mxu0 0.0
    %1100 = vmatpush1.msra.mxu0 0.0
    %1101 = vmatprep.subr.mxu0 0.0
    %1102 = vmatpush1.msra.mxu0 0.0
    %1103 = vmatprep.subr.mxu0 0.0
    %1104 = vmatpush1.msra.mxu0 0.0
    %1105 = vmatprep.subr.mxu0 0.0
    %1106 = vmatpush1.msra.mxu0 0.0
    %1107 = vmatprep.subr.mxu0 0.0
    %1108 = vmatpush1.msra.mxu0 0.0
    %1109 = vmatprep.subr.mxu0 0.0
    %1110 = vmatpush1.msra.mxu0 0.0
    %1111 = vmatprep.subr.mxu0 0.0
    %1112 = vmatpush1.msra.mxu0 0.0
    %1113 = vmatprep.subr.mxu0 0.0
    %1114 = vmatpush1.msra.mxu0 0.0
    %1115 = vmatprep.subr.mxu0 0.0
    %1116 = vmatpush1.msra.mxu0 0.0
    %1117 = vmatprep.subr.mxu0 0.0
    %1118 = vmatpush1.msra.mxu0 0.0
    %1119 = vmatprep.subr.mxu0 0.0
    %1120 = vmatpush1.msra.mxu0 0.0
    %1121 = vmatprep.subr.mxu0 0.0
    %1122 = vmatpush1.msra.mxu0 0.0
    %1123 = vmatprep.subr.mxu0 0.0
    %1124 = vmatpush1.msra.mxu0 0.0
    %1125 = vmatprep.subr.mxu0 0.0
    %1126 = vmatpush1.msra.mxu0 0.0
    %1127 = vmatprep.subr.mxu0 0.0
    %1128 = vmatpush1.msra.mxu0 0.0
    %1129 = vmatprep.subr.mxu0 0.0
    %1130 = vmatpush1.msra.mxu0 0.0
    %1131 = vmatprep.subr.mxu0 0.0
    %1132 = vmatpush1.msra.mxu0 0.0
    %1133 = vmatprep.subr.mxu0 0.0
    %1134 = vmatpush1.msra.mxu0 0.0
    %1135 = vmatprep.mubr.f32.mxu0 0.0
    %1136 = vmatmul.mubr.f32.gmra.mrb[0].mxu0 %v1069
    %v1137 = vpop.f32.mrb[0].mxu0
    %v1138 = vadd.f32 %v1066, %v1137
    %v1139 = vpop.f32.mrb[0].mxu0
    %1140 = vdwg.mxu0
    %v1141 = vmax.f32 %v1138, 0.0
    %v1143 = vlaneseq
    %v1144 = vshrl.u32 %v1143, 7
    %v1145 = vsub.s32 0, %v1144
    %v1146 = vrot.slane %v86, %v1145
    %v1149 = vsel %vm259, %v1141, 0
    %1151 = vmatprep.subr.mxu0 0.0
    %1152 = vmatpush1.msra.mxu0 %v70
    %1153 = vmatprep.subr.mxu0 0.0
    %1154 = vmatpush1.msra.mxu0 %v71
    %1155 = vmatprep.subr.mxu0 0.0
    %1156 = vmatpush1.msra.mxu0 %v72
    %1157 = vmatprep.subr.mxu0 0.0
    %1158 = vmatpush1.msra.mxu0 %v73
    %1159 = vmatprep.subr.mxu0 0.0
    %1160 = vmatpush1.msra.mxu0 0.0
    %1161 = vmatprep.subr.mxu0 0.0
    %1162 = vmatpush1.msra.mxu0 0.0
    %1163 = vmatprep.subr.mxu0 0.0
    %1164 = vmatpush1.msra.mxu0 0.0
    %1165 = vmatprep.subr.mxu0 0.0
    %1166 = vmatpush1.msra.mxu0 0.0
    %1167 = vmatprep.subr.mxu0 0.0
    %1168 = vmatpush1.msra.mxu0 0.0
    %1169 = vmatprep.subr.mxu0 0.0
    %1170 = vmatpush1.msra.mxu0 0.0
    %1171 = vmatprep.subr.mxu0 0.0
    %1172 = vmatpush1.msra.mxu0 0.0
    %1173 = vmatprep.subr.mxu0 0.0
    %1174 = vmatpush1.msra.mxu0 0.0
    %1175 = vmatprep.subr.mxu0 0.0
    %1176 = vmatpush1.msra.mxu0 0.0
    %1177 = vmatprep.subr.mxu0 0.0
    %1178 = vmatpush1.msra.mxu0 0.0
    %1179 = vmatprep.subr.mxu0 0.0
    %1180 = vmatpush1.msra.mxu0 0.0
    %1181 = vmatprep.subr.mxu0 0.0
    %1182 = vmatpush1.msra.mxu0 0.0
    %1183 = vmatprep.subr.mxu0 0.0
    %1184 = vmatpush1.msra.mxu0 0.0
    %1185 = vmatprep.subr.mxu0 0.0
    %1186 = vmatpush1.msra.mxu0 0.0
    %1187 = vmatprep.subr.mxu0 0.0
    %1188 = vmatpush1.msra.mxu0 0.0
    %1189 = vmatprep.subr.mxu0 0.0
    %1190 = vmatpush1.msra.mxu0 0.0
    %1191 = vmatprep.subr.mxu0 0.0
    %1192 = vmatpush1.msra.mxu0 0.0
    %1193 = vmatprep.subr.mxu0 0.0
    %1194 = vmatpush1.msra.mxu0 0.0
    %1195 = vmatprep.subr.mxu0 0.0
    %1196 = vmatpush1.msra.mxu0 0.0
    %1197 = vmatprep.subr.mxu0 0.0
    %1198 = vmatpush1.msra.mxu0 0.0
    %1199 = vmatprep.subr.mxu0 0.0
    %1200 = vmatpush1.msra.mxu0 0.0
    %1201 = vmatprep.subr.mxu0 0.0
    %1202 = vmatpush1.msra.mxu0 0.0
    %1203 = vmatprep.subr.mxu0 0.0
    %1204 = vmatpush1.msra.mxu0 0.0
    %1205 = vmatprep.subr.mxu0 0.0
    %1206 = vmatpush1.msra.mxu0 0.0
    %1207 = vmatprep.subr.mxu0 0.0
    %1208 = vmatpush1.msra.mxu0 0.0
    %1209 = vmatprep.subr.mxu0 0.0
    %1210 = vmatpush1.msra.mxu0 0.0
    %1211 = vmatprep.subr.mxu0 0.0
    %1212 = vmatpush1.msra.mxu0 0.0
    %1213 = vmatprep.subr.mxu0 0.0
    %1214 = vmatpush1.msra.mxu0 0.0
    %1215 = vmatprep.mubr.f32.mxu0 0.0
    %1216 = vmatmul.mubr.f32.gmra.mrb[0].mxu0 %v1149
    %v1217 = vpop.f32.mrb[0].mxu0
    %v1218 = vadd.f32 %v1146, %v1217
    %v1219 = vpop.f32.mrb[0].mxu0
    %1220 = vdwg.mxu0
    %1221 = vst.msk [vmem:[%s7] sm:$0xff] %vm89, %v1218
    // Predicated region
    $region34: #{np_forward.1} parent=1 // pred_check
      _
    $region35: #{np_forward.1} parent=1 // pred_check_branch
      %1223 = sbr.rel (0) target = $region37
    $region36: #{np_forward.1} parent=1 // pred_region
      _
    $region37: #{np_forward.1} parent=1 // pred_fallthru
      _
    // Predicated region
    $region38: #{np_forward.1} parent=1 // pred_check
      _
    $region39: #{np_forward.1} parent=1 // pred_check_branch
      %1225 = sbr.rel (0) target = $region41
    $region40: #{np_forward.1} parent=1 // pred_region
      _
    $region41: #{np_forward.1} parent=1 // pred_fallthru
      _
    // Predicated region
    $region42: #{np_forward.1} parent=1 // pred_check
      _
    $region43: #{np_forward.1} parent=1 // pred_check_branch
      %1227 = sbr.rel (0) target = $region45
    $region44: #{np_forward.1} parent=1 // pred_region
      _
    $region45: #{np_forward.1} parent=1 // pred_fallthru
      _
    // Predicated region
    $region46: #{np_forward.1} parent=1 // pred_check
      _
    $region47: #{np_forward.1} parent=1 // pred_check_branch
      %1229 = sbr.rel (0) target = $region49
    $region48: #{np_forward.1} parent=1 // pred_region
      _
    $region49: #{np_forward.1} parent=1 // pred_fallthru
      _
    %1230 = vsyncpa [#allocation3], 1

</llo_original>
